<compile_context>
chip_gen: v5e
topology: v5e:2x2
jax: 0.10.0
libtpu: 0.0.40
codegen_flags: <defaults>
</compile_context>

<pallas_src>
import math

import jax
import jax.numpy as jnp
import numpy as np
from jax.experimental import pallas as pl
from jax.experimental.pallas import tpu as pltpu

EPS = 1e-6  # module spec uses partial(nn.LayerNorm, eps=1e-06)


def _make_encoder_kernel(num_heads, head_dim, hidden_dim, bt, seq, matmul_dtype):
    D = hidden_dim
    R = bt * seq
    inv_sqrt2 = 1.0 / math.sqrt(2.0)
    approx_recip = jnp.dtype(matmul_dtype) != jnp.dtype(jnp.float32)

    def kernel(inp_ref, clue_ref,
               g1_ref, b1_ref, g1c_ref, b1c_ref,
               wq_ref, bq_ref, wkv_ref, bkv_ref, wo_ref, bo_ref,
               g2_ref, b2_ref, w1_ref, bm1_ref, w2_ref, bm2_ref,
               out_ref, attn_ref):

        def layernorm(x, g_ref, b_ref):
            mu = jnp.mean(x, axis=-1, keepdims=True)
            xc = x - mu
            var = jnp.mean(xc * xc, axis=-1, keepdims=True)
            return xc * jax.lax.rsqrt(var + EPS) * g_ref[...] + b_ref[...]

        def dense(x_f32, w_ref, b_ref):
            # bf16 (or f32) operands into the MXU, f32 accumulation, f32 bias add.
            return (jnp.dot(x_f32.astype(matmul_dtype), w_ref[...],
                            preferred_element_type=jnp.float32) + b_ref[...])

        inp = inp_ref[...].reshape(R, D).astype(jnp.float32)    # residual + K/V source
        clue = clue_ref[...].reshape(R, D).astype(jnp.float32)  # query source

        x = layernorm(inp, g1_ref, b1_ref)      # ln_1(input)
        z = layernorm(clue, g1c_ref, b1c_ref)   # ln_1_(clue)

        # attention in-projections: q (1/sqrt(Dh) pre-folded into wq/bq), packed k|v
        q = dense(z, wq_ref, bq_ref)            # (R, D)   f32
        kv = dense(x, wkv_ref, bkv_ref)         # (R, 2D)  f32

        q3 = q.reshape(bt, seq, D).astype(matmul_dtype)
        kv3 = kv.reshape(bt, seq, 2 * D).astype(matmul_dtype)

        # Per-head attention, batched over the bt batch rows of this block; each head's
        # output is written straight into the VMEM scratch at a static lane offset.
        for h in range(num_heads):
            hs = slice(h * head_dim, (h + 1) * head_dim)
            vs = slice(D + h * head_dim, D + (h + 1) * head_dim)
            qh = q3[:, :, hs]                   # (bt, S, Dh)
            kh = kv3[:, :, hs]                  # (bt, S, Dh)
            vh = kv3[:, :, vs]                  # (bt, S, Dh)
            s = jnp.einsum("bqd,bkd->bqk", qh, kh,
                           preferred_element_type=jnp.float32)   # (bt, S, S) f32 scores
            s = s - jnp.max(s, axis=-1, keepdims=True)
            p = jnp.exp(s)
            denom = jnp.sum(p, axis=-1, keepdims=True)
            p = p * pl.reciprocal(denom, approx=approx_recip)    # EUP reciprocal (approx on bf16 path)
            o = jnp.einsum("bqk,bkd->bqd", p.astype(matmul_dtype), vh,
                           preferred_element_type=jnp.float32)   # (bt, S, Dh) f32
            attn_ref[:, :, hs] = o

        attn = attn_ref[...].reshape(R, D)      # f32
        proj = dense(attn, wo_ref, bo_ref)      # out-projection
        # TODO(synk): dropout / attention_dropout are identity at inference; not modeled.
        xres = proj + inp                       # x = dropout(attn) + input

        # MLP block: ln_2 -> Linear -> GELU(exact erf) -> Linear
        y = layernorm(xres, g2_ref, b2_ref)
        h1 = dense(y, w1_ref, bm1_ref)
        h1 = 0.5 * h1 * (1.0 + jax.lax.erf(h1 * inv_sqrt2))
        y2 = dense(h1, w2_ref, bm2_ref)

        out_ref[...] = (xres + y2).reshape(bt, seq, D).astype(out_ref.dtype)

    return kernel


def _pick_batch_block(batch, seq, target_rows=256):
    """Batch elements per grid step: pack rows toward `target_rows` per step while
    keeping >= 2 grid steps when possible (v7x has 2 TensorCores per chip)."""
    divisors = [d for d in range(1, batch + 1) if batch % d == 0]
    cands = [d for d in divisors if batch // d >= 2] or divisors
    fitting = [d for d in cands if d * seq <= target_rows]
    return max(fitting) if fitting else min(cands)


def _vmem_limit_bytes(needed_bytes):
    cap = 64 * 2**20                       # conservative default: v7x physical VMEM / TC
    try:
        cap = pltpu.get_tpu_info().vmem_capacity_bytes
    except Exception:
        pass
    limit = max(32 * 2**20, 2 * needed_bytes)
    return int(min(cap - 4 * 2**20, limit))  # leave headroom for compiler scratch


def cm_encoder_block(inp, clue, params, num_heads, *,
                     matmul_dtype=jnp.bfloat16, batch_block=None):
    """Fused CMEncoderBlock forward. `params` use PyTorch-equivalent shapes:
    weights (in_dim, out_dim), LayerNorm/bias parameters 1-D."""
    B, S, D = inp.shape
    assert D % num_heads == 0
    head_dim = D // num_heads
    M = params["w1"].shape[1]
    scale = 1.0 / math.sqrt(head_dim)

    bt = _pick_batch_block(B, S) if batch_block is None else batch_block
    assert B % bt == 0, "batch block must divide the batch"
    grid = (B // bt,)

    row = lambda v: jnp.asarray(v, jnp.float32).reshape(1, -1)
    wcast = lambda w: jnp.asarray(w, matmul_dtype)

    # Fold the attention scale into wq/bq, pack K|V into one (D, 2D) projection,
    # and store weight matrices in bf16 (biases / LN params stay f32).
    kernel_params = [
        row(params["ln1_g"]), row(params["ln1_b"]),
        row(params["ln1c_g"]), row(params["ln1c_b"]),
        wcast(params["wq"] * scale), row(params["bq"]) * scale,
        wcast(jnp.concatenate([params["wk"], params["wv"]], axis=1)),
        jnp.concatenate([row(params["bk"]), row(params["bv"])], axis=1),
        wcast(params["wo"]), row(params["bo"]),
        row(params["ln2_g"]), row(params["ln2_b"]),
        wcast(params["w1"]), row(params["bm1"]),
        wcast(params["w2"]), row(params["bm2"]),
    ]

    kernel = _make_encoder_kernel(num_heads, head_dim, D, bt, S, matmul_dtype)

    act_block = (bt, S, D)
    act_spec = pl.BlockSpec(act_block, lambda b: (b, 0, 0))
    # Full-array, grid-invariant parameter blocks (constant index map -> DMA'd once).
    param_specs = [pl.BlockSpec(p.shape, lambda b: (0, 0)) for p in kernel_params]

    # Rough VMEM budget: params (possibly double-buffered) + double-buffered activation
    # blocks + attention scratch + in-kernel intermediates.
    param_bytes = sum(int(np.prod(p.shape)) * p.dtype.itemsize for p in kernel_params)
    act_bytes = bt * S * D * 4
    needed = (2 * param_bytes + 3 * 2 * act_bytes + act_bytes
              + 2 * bt * S * (3 * D + M) * 4)

    return pl.pallas_call(
        kernel,
        out_shape=jax.ShapeDtypeStruct((B, S, D), inp.dtype),
        grid_spec=pltpu.PrefetchScalarGridSpec(
            num_scalar_prefetch=0,
            grid=grid,
            in_specs=[act_spec, act_spec] + param_specs,
            out_specs=pl.BlockSpec(act_block, lambda b: (b, 0, 0)),
            scratch_shapes=[pltpu.VMEM((bt, S, D), jnp.float32)],
        ),
        compiler_params=pltpu.CompilerParams(
            dimension_semantics=("parallel",),
            vmem_limit_bytes=_vmem_limit_bytes(needed),
        ),
    )(inp, clue, *kernel_params)


def init_params(key, hidden_dim, mlp_dim):
    D, M = hidden_dim, mlp_dim
    ks = jax.random.split(key, 12)

    def xavier(k, fan_in, fan_out):
        bound = math.sqrt(6.0 / (fan_in + fan_out))
        return jax.random.uniform(k, (fan_in, fan_out), jnp.float32, -bound, bound)

    # PyTorch inits the attention biases to zero; small random values are used here
    # so the test also exercises the kernel's bias scaling / packing paths.
    small = lambda k, n: 0.02 * jax.random.normal(k, (n,), jnp.float32)
    return {
        "ln1_g": jnp.ones((D,), jnp.float32), "ln1_b": jnp.zeros((D,), jnp.float32),
        "ln1c_g": jnp.ones((D,), jnp.float32), "ln1c_b": jnp.zeros((D,), jnp.float32),
        "ln2_g": jnp.ones((D,), jnp.float32), "ln2_b": jnp.zeros((D,), jnp.float32),
        "wq": xavier(ks[0], D, D), "bq": small(ks[8], D),
        "wk": xavier(ks[1], D, D), "bk": small(ks[9], D),
        "wv": xavier(ks[2], D, D), "bv": small(ks[10], D),
        "wo": xavier(ks[3], D, D), "bo": small(ks[11], D),
        "w1": xavier(ks[4], D, M), "bm1": 1e-6 * jax.random.normal(ks[5], (M,), jnp.float32),
        "w2": xavier(ks[6], M, D), "bm2": 1e-6 * jax.random.normal(ks[7], (D,), jnp.float32),
    }


def reference(inp, clue, p, num_heads):
    """Pure-JAX f32 reference of the PyTorch forward (inference mode)."""
    def ln(x, g, b):
        mu = x.mean(-1, keepdims=True)
        var = ((x - mu) ** 2).mean(-1, keepdims=True)
        return (x - mu) / jnp.sqrt(var + EPS) * g + b

    B, S, D = inp.shape
    H = num_heads
    Dh = D // H
    x = ln(inp, p["ln1_g"], p["ln1_b"])
    z = ln(clue, p["ln1c_g"], p["ln1c_b"])
    q = z @ p["wq"] + p["bq"]
    k = x @ p["wk"] + p["bk"]
    v = x @ p["wv"] + p["bv"]
    qh = q.reshape(B, S, H, Dh).transpose(0, 2, 1, 3)
    kh = k.reshape(B, S, H, Dh).transpose(0, 2, 1, 3)
    vh = v.reshape(B, S, H, Dh).transpose(0, 2, 1, 3)
    s = jnp.einsum("bhqd,bhkd->bhqk", qh, kh) / math.sqrt(Dh)
    a = jax.nn.softmax(s, axis=-1)
    o = jnp.einsum("bhqk,bhkd->bhqd", a, vh).transpose(0, 2, 1, 3).reshape(B, S, D)
    o = o @ p["wo"] + p["bo"]
    xr = o + inp
    y = ln(xr, p["ln2_g"], p["ln2_b"])
    h = y @ p["w1"] + p["bm1"]
    h = 0.5 * h * (1.0 + jax.lax.erf(h / math.sqrt(2.0)))
    return xr + h @ p["w2"] + p["bm2"]


if __name__ == "__main__":
    num_heads = 4
    hidden_dim = 32
    mlp_dim = 64
    B, S = 2, 8

    key = jax.random.PRNGKey(0)
    k_in, k_clue, k_par = jax.random.split(key, 3)
    inp = jax.random.normal(k_in, (B, S, hidden_dim), jnp.float32)
    clue = jax.random.normal(k_clue, (B, S, hidden_dim), jnp.float32)
    params = init_params(k_par, hidden_dim, mlp_dim)

    ref = reference(inp, clue, params, num_heads)

    # f32 MXU path: tight check against the PyTorch-equivalent reference.
    out_f32 = jax.block_until_ready(
        cm_encoder_block(inp, clue, params, num_heads, matmul_dtype=jnp.float32))
    np.testing.assert_allclose(np.asarray(out_f32), np.asarray(ref), rtol=2e-4, atol=2e-4)

    # bf16 MXU path (production configuration): bf16 operands round to ~2^-9, so a
    # correspondingly looser tolerance is used.
    out_bf16 = jax.block_until_ready(
        cm_encoder_block(inp, clue, params, num_heads, matmul_dtype=jnp.bfloat16))
    np.testing.assert_allclose(np.asarray(out_bf16), np.asarray(ref), rtol=5e-2, atol=5e-2)

    print("KERNEL_OK")
</pallas_src>

<mosaic_0001>
module attributes {stable_mosaic.version = 11 : i64} {
  func.func @kernel(%arg0: i32, %arg1: memref<1x8x32xf32, #tpu.memory_space<vmem>>, %arg2: memref<1x8x32xf32, #tpu.memory_space<vmem>>, %arg3: memref<1x32xf32, #tpu.memory_space<vmem>>, %arg4: memref<1x32xf32, #tpu.memory_space<vmem>>, %arg5: memref<1x32xf32, #tpu.memory_space<vmem>>, %arg6: memref<1x32xf32, #tpu.memory_space<vmem>>, %arg7: memref<32x32xf32, #tpu.memory_space<vmem>>, %arg8: memref<1x32xf32, #tpu.memory_space<vmem>>, %arg9: memref<32x64xf32, #tpu.memory_space<vmem>>, %arg10: memref<1x64xf32, #tpu.memory_space<vmem>>, %arg11: memref<32x32xf32, #tpu.memory_space<vmem>>, %arg12: memref<1x32xf32, #tpu.memory_space<vmem>>, %arg13: memref<1x32xf32, #tpu.memory_space<vmem>>, %arg14: memref<1x32xf32, #tpu.memory_space<vmem>>, %arg15: memref<32x64xf32, #tpu.memory_space<vmem>>, %arg16: memref<1x64xf32, #tpu.memory_space<vmem>>, %arg17: memref<64x32xf32, #tpu.memory_space<vmem>>, %arg18: memref<1x32xf32, #tpu.memory_space<vmem>>, %arg19: memref<1x8x32xf32, #tpu.memory_space<vmem>>, %arg20: memref<1x8x32xf32, #tpu.memory_space<vmem>>) attributes {dimension_semantics = [#tpu.dimension_semantics<parallel>], iteration_bounds = array<i64: 2>, scalar_prefetch = 0 : i64, scratch_operands = 1 : i64, tpu.core_type = #tpu.core_type<tc>, window_params = [{transform_indices = @transform_0, window_bounds = array<i64: 1, 8, 32>}, {transform_indices = @transform_1, window_bounds = array<i64: 1, 8, 32>}, {pipeline_mode = #tpu.pipeline_mode<synchronous>, transform_indices = @transform_2, window_bounds = array<i64: 1, 32>}, {pipeline_mode = #tpu.pipeline_mode<synchronous>, transform_indices = @transform_3, window_bounds = array<i64: 1, 32>}, {pipeline_mode = #tpu.pipeline_mode<synchronous>, transform_indices = @transform_4, window_bounds = array<i64: 1, 32>}, {pipeline_mode = #tpu.pipeline_mode<synchronous>, transform_indices = @transform_5, window_bounds = array<i64: 1, 32>}, {pipeline_mode = #tpu.pipeline_mode<synchronous>, transform_indices = @transform_6, window_bounds = array<i64: 32, 32>}, {pipeline_mode = #tpu.pipeline_mode<synchronous>, transform_indices = @transform_7, window_bounds = array<i64: 1, 32>}, {pipeline_mode = #tpu.pipeline_mode<synchronous>, transform_indices = @transform_8, window_bounds = array<i64: 32, 64>}, {pipeline_mode = #tpu.pipeline_mode<synchronous>, transform_indices = @transform_9, window_bounds = array<i64: 1, 64>}, {pipeline_mode = #tpu.pipeline_mode<synchronous>, transform_indices = @transform_10, window_bounds = array<i64: 32, 32>}, {pipeline_mode = #tpu.pipeline_mode<synchronous>, transform_indices = @transform_11, window_bounds = array<i64: 1, 32>}, {pipeline_mode = #tpu.pipeline_mode<synchronous>, transform_indices = @transform_12, window_bounds = array<i64: 1, 32>}, {pipeline_mode = #tpu.pipeline_mode<synchronous>, transform_indices = @transform_13, window_bounds = array<i64: 1, 32>}, {pipeline_mode = #tpu.pipeline_mode<synchronous>, transform_indices = @transform_14, window_bounds = array<i64: 32, 64>}, {pipeline_mode = #tpu.pipeline_mode<synchronous>, transform_indices = @transform_15, window_bounds = array<i64: 1, 64>}, {pipeline_mode = #tpu.pipeline_mode<synchronous>, transform_indices = @transform_16, window_bounds = array<i64: 64, 32>}, {pipeline_mode = #tpu.pipeline_mode<synchronous>, transform_indices = @transform_17, window_bounds = array<i64: 1, 32>}, {transform_indices = @transform_18, window_bounds = array<i64: 1, 8, 32>}]} {
    %c0 = arith.constant 0 : index
    %c0_0 = arith.constant 0 : index
    %c0_1 = arith.constant 0 : index
    %0 = vector.load %arg1[%c0, %c0_0, %c0_1] : memref<1x8x32xf32, #tpu.memory_space<vmem>>, vector<1x8x32xf32>
    %1 = vector.shape_cast %0 : vector<1x8x32xf32> to vector<8x32xf32>
    %c0_2 = arith.constant 0 : index
    %c0_3 = arith.constant 0 : index
    %c0_4 = arith.constant 0 : index
    %2 = vector.load %arg2[%c0_2, %c0_3, %c0_4] : memref<1x8x32xf32, #tpu.memory_space<vmem>>, vector<1x8x32xf32>
    %3 = vector.shape_cast %2 : vector<1x8x32xf32> to vector<8x32xf32>
    %cst = arith.constant dense<0.000000e+00> : vector<8xf32>
    %4 = vector.multi_reduction <add>, %1, %cst [1] : vector<8x32xf32> to vector<8xf32>
    %5 = vector.shape_cast %4 : vector<8xf32> to vector<8x1xf32>
    %cst_5 = arith.constant 3.200000e+01 : f32
    %6 = vector.broadcast %cst_5 : f32 to vector<8x1xf32>
    %7 = arith.divf %5, %6 : vector<8x1xf32>
    %8 = vector.broadcast %7 : vector<8x1xf32> to vector<8x32xf32>
    %9 = arith.subf %1, %8 : vector<8x32xf32>
    %10 = arith.mulf %9, %9 : vector<8x32xf32>
    %cst_6 = arith.constant dense<0.000000e+00> : vector<8xf32>
    %11 = vector.multi_reduction <add>, %10, %cst_6 [1] : vector<8x32xf32> to vector<8xf32>
    %12 = vector.shape_cast %11 : vector<8xf32> to vector<8x1xf32>
    %cst_7 = arith.constant 3.200000e+01 : f32
    %13 = vector.broadcast %cst_7 : f32 to vector<8x1xf32>
    %14 = arith.divf %12, %13 : vector<8x1xf32>
    %cst_8 = arith.constant 9.99999997E-7 : f32
    %15 = vector.broadcast %cst_8 : f32 to vector<8x1xf32>
    %16 = arith.addf %14, %15 : vector<8x1xf32>
    %17 = math.rsqrt %16 : vector<8x1xf32>
    %18 = vector.broadcast %17 : vector<8x1xf32> to vector<8x32xf32>
    %19 = arith.mulf %9, %18 : vector<8x32xf32>
    %c0_9 = arith.constant 0 : index
    %c0_10 = arith.constant 0 : index
    %20 = vector.load %arg3[%c0_9, %c0_10] : memref<1x32xf32, #tpu.memory_space<vmem>>, vector<1x32xf32>
    %21 = vector.broadcast %20 : vector<1x32xf32> to vector<8x32xf32>
    %22 = arith.mulf %19, %21 : vector<8x32xf32>
    %c0_11 = arith.constant 0 : index
    %c0_12 = arith.constant 0 : index
    %23 = vector.load %arg4[%c0_11, %c0_12] : memref<1x32xf32, #tpu.memory_space<vmem>>, vector<1x32xf32>
    %24 = vector.broadcast %23 : vector<1x32xf32> to vector<8x32xf32>
    %25 = arith.addf %22, %24 : vector<8x32xf32>
    %cst_13 = arith.constant dense<0.000000e+00> : vector<8xf32>
    %26 = vector.multi_reduction <add>, %3, %cst_13 [1] : vector<8x32xf32> to vector<8xf32>
    %27 = vector.shape_cast %26 : vector<8xf32> to vector<8x1xf32>
    %cst_14 = arith.constant 3.200000e+01 : f32
    %28 = vector.broadcast %cst_14 : f32 to vector<8x1xf32>
    %29 = arith.divf %27, %28 : vector<8x1xf32>
    %30 = vector.broadcast %29 : vector<8x1xf32> to vector<8x32xf32>
    %31 = arith.subf %3, %30 : vector<8x32xf32>
    %32 = arith.mulf %31, %31 : vector<8x32xf32>
    %cst_15 = arith.constant dense<0.000000e+00> : vector<8xf32>
    %33 = vector.multi_reduction <add>, %32, %cst_15 [1] : vector<8x32xf32> to vector<8xf32>
    %34 = vector.shape_cast %33 : vector<8xf32> to vector<8x1xf32>
    %cst_16 = arith.constant 3.200000e+01 : f32
    %35 = vector.broadcast %cst_16 : f32 to vector<8x1xf32>
    %36 = arith.divf %34, %35 : vector<8x1xf32>
    %cst_17 = arith.constant 9.99999997E-7 : f32
    %37 = vector.broadcast %cst_17 : f32 to vector<8x1xf32>
    %38 = arith.addf %36, %37 : vector<8x1xf32>
    %39 = math.rsqrt %38 : vector<8x1xf32>
    %40 = vector.broadcast %39 : vector<8x1xf32> to vector<8x32xf32>
    %41 = arith.mulf %31, %40 : vector<8x32xf32>
    %c0_18 = arith.constant 0 : index
    %c0_19 = arith.constant 0 : index
    %42 = vector.load %arg5[%c0_18, %c0_19] : memref<1x32xf32, #tpu.memory_space<vmem>>, vector<1x32xf32>
    %43 = vector.broadcast %42 : vector<1x32xf32> to vector<8x32xf32>
    %44 = arith.mulf %41, %43 : vector<8x32xf32>
    %c0_20 = arith.constant 0 : index
    %c0_21 = arith.constant 0 : index
    %45 = vector.load %arg6[%c0_20, %c0_21] : memref<1x32xf32, #tpu.memory_space<vmem>>, vector<1x32xf32>
    %46 = vector.broadcast %45 : vector<1x32xf32> to vector<8x32xf32>
    %47 = arith.addf %44, %46 : vector<8x32xf32>
    %c0_22 = arith.constant 0 : index
    %c0_23 = arith.constant 0 : index
    %48 = vector.load %arg7[%c0_22, %c0_23] : memref<32x32xf32, #tpu.memory_space<vmem>>, vector<32x32xf32>
    %cst_24 = arith.constant dense<0.000000e+00> : vector<8x32xf32>
    %49 = tpu.matmul %47, %48, %cst_24 {dimension_numbers = #tpu.dot_dimension_numbers<[1], [0], [0], [1], [0, 0, 1, 1], [], []>} : vector<8x32xf32>, vector<32x32xf32>, vector<8x32xf32> -> vector<8x32xf32>
    %c0_25 = arith.constant 0 : index
    %c0_26 = arith.constant 0 : index
    %50 = vector.load %arg8[%c0_25, %c0_26] : memref<1x32xf32, #tpu.memory_space<vmem>>, vector<1x32xf32>
    %51 = vector.broadcast %50 : vector<1x32xf32> to vector<8x32xf32>
    %52 = arith.addf %49, %51 : vector<8x32xf32>
    %c0_27 = arith.constant 0 : index
    %c0_28 = arith.constant 0 : index
    %53 = vector.load %arg9[%c0_27, %c0_28] : memref<32x64xf32, #tpu.memory_space<vmem>>, vector<32x64xf32>
    %cst_29 = arith.constant dense<0.000000e+00> : vector<8x64xf32>
    %54 = tpu.matmul %25, %53, %cst_29 {dimension_numbers = #tpu.dot_dimension_numbers<[1], [0], [0], [1], [0, 0, 1, 1], [], []>} : vector<8x32xf32>, vector<32x64xf32>, vector<8x64xf32> -> vector<8x64xf32>
    %c0_30 = arith.constant 0 : index
    %c0_31 = arith.constant 0 : index
    %55 = vector.load %arg10[%c0_30, %c0_31] : memref<1x64xf32, #tpu.memory_space<vmem>>, vector<1x64xf32>
    %56 = vector.broadcast %55 : vector<1x64xf32> to vector<8x64xf32>
    %57 = arith.addf %54, %56 : vector<8x64xf32>
    %58 = vector.shape_cast %52 : vector<8x32xf32> to vector<1x8x32xf32>
    %59 = vector.shape_cast %57 : vector<8x64xf32> to vector<1x8x64xf32>
    %60 = vector.extract_strided_slice %58 {offsets = [0, 0, 0], sizes = [1, 8, 8], strides = [1, 1, 1]} : vector<1x8x32xf32> to vector<1x8x8xf32>
    %61 = vector.extract_strided_slice %59 {offsets = [0, 0, 0], sizes = [1, 8, 8], strides = [1, 1, 1]} : vector<1x8x64xf32> to vector<1x8x8xf32>
    %62 = vector.extract_strided_slice %59 {offsets = [0, 0, 32], sizes = [1, 8, 8], strides = [1, 1, 1]} : vector<1x8x64xf32> to vector<1x8x8xf32>
    "tpu.trace_start"() <{level = 10 : i32, message = "bqd,bkd->bqk"}> : () -> ()
    %cst_32 = arith.constant dense<0.000000e+00> : vector<1x8x8xf32>
    %63 = tpu.matmul %60, %61, %cst_32 {dimension_numbers = #tpu.dot_dimension_numbers<[2], [2], [1], [1], [0, 0, 0, 1, 1, 1], [0], [0]>} : vector<1x8x8xf32>, vector<1x8x8xf32>, vector<1x8x8xf32> -> vector<1x8x8xf32>
    "tpu.trace_stop"() : () -> ()
    %cst_33 = arith.constant dense<0xFF800000> : vector<1x8xf32>
    %64 = vector.multi_reduction <maximumf>, %63, %cst_33 [2] : vector<1x8x8xf32> to vector<1x8xf32>
    %65 = vector.shape_cast %64 : vector<1x8xf32> to vector<1x8x1xf32>
    %66 = vector.broadcast %65 : vector<1x8x1xf32> to vector<1x8x8xf32>
    %67 = arith.subf %63, %66 : vector<1x8x8xf32>
    %68 = math.exp %67 : vector<1x8x8xf32>
    %cst_34 = arith.constant dense<0.000000e+00> : vector<1x8xf32>
    %69 = vector.multi_reduction <add>, %68, %cst_34 [2] : vector<1x8x8xf32> to vector<1x8xf32>
    %70 = vector.shape_cast %69 : vector<1x8xf32> to vector<1x8x1xf32>
    %71 = tpu.reciprocal %70 : vector<1x8x1xf32> -> vector<1x8x1xf32>
    %72 = vector.broadcast %71 : vector<1x8x1xf32> to vector<1x8x8xf32>
    %73 = arith.mulf %68, %72 : vector<1x8x8xf32>
    "tpu.trace_start"() <{level = 10 : i32, message = "bqk,bkd->bqd"}> : () -> ()
    %cst_35 = arith.constant dense<0.000000e+00> : vector<1x8x8xf32>
    %74 = tpu.matmul %73, %62, %cst_35 {dimension_numbers = #tpu.dot_dimension_numbers<[2], [1], [1], [2], [0, 0, 0, 1, 1, 2], [0], [0]>} : vector<1x8x8xf32>, vector<1x8x8xf32>, vector<1x8x8xf32> -> vector<1x8x8xf32>
    "tpu.trace_stop"() : () -> ()
    %c0_36 = arith.constant 0 : index
    %c0_37 = arith.constant 0 : index
    %c0_38 = arith.constant 0 : index
    %75 = vector.load %arg20[%c0_36, %c0_37, %c0_38] : memref<1x8x32xf32, #tpu.memory_space<vmem>>, vector<1x8x8xf32>
    tpu.vector_store %arg20[%c0_36, %c0_37, %c0_38], %74 {strides = array<i32>} : memref<1x8x32xf32, #tpu.memory_space<vmem>>, vector<1x8x8xf32>,
    %76 = vector.extract_strided_slice %58 {offsets = [0, 0, 8], sizes = [1, 8, 8], strides = [1, 1, 1]} : vector<1x8x32xf32> to vector<1x8x8xf32>
    %77 = vector.extract_strided_slice %59 {offsets = [0, 0, 8], sizes = [1, 8, 8], strides = [1, 1, 1]} : vector<1x8x64xf32> to vector<1x8x8xf32>
    %78 = vector.extract_strided_slice %59 {offsets = [0, 0, 40], sizes = [1, 8, 8], strides = [1, 1, 1]} : vector<1x8x64xf32> to vector<1x8x8xf32>
    "tpu.trace_start"() <{level = 10 : i32, message = "bqd,bkd->bqk"}> : () -> ()
    %cst_39 = arith.constant dense<0.000000e+00> : vector<1x8x8xf32>
    %79 = tpu.matmul %76, %77, %cst_39 {dimension_numbers = #tpu.dot_dimension_numbers<[2], [2], [1], [1], [0, 0, 0, 1, 1, 1], [0], [0]>} : vector<1x8x8xf32>, vector<1x8x8xf32>, vector<1x8x8xf32> -> vector<1x8x8xf32>
    "tpu.trace_stop"() : () -> ()
    %cst_40 = arith.constant dense<0xFF800000> : vector<1x8xf32>
    %80 = vector.multi_reduction <maximumf>, %79, %cst_40 [2] : vector<1x8x8xf32> to vector<1x8xf32>
    %81 = vector.shape_cast %80 : vector<1x8xf32> to vector<1x8x1xf32>
    %82 = vector.broadcast %81 : vector<1x8x1xf32> to vector<1x8x8xf32>
    %83 = arith.subf %79, %82 : vector<1x8x8xf32>
    %84 = math.exp %83 : vector<1x8x8xf32>
    %cst_41 = arith.constant dense<0.000000e+00> : vector<1x8xf32>
    %85 = vector.multi_reduction <add>, %84, %cst_41 [2] : vector<1x8x8xf32> to vector<1x8xf32>
    %86 = vector.shape_cast %85 : vector<1x8xf32> to vector<1x8x1xf32>
    %87 = tpu.reciprocal %86 : vector<1x8x1xf32> -> vector<1x8x1xf32>
    %88 = vector.broadcast %87 : vector<1x8x1xf32> to vector<1x8x8xf32>
    %89 = arith.mulf %84, %88 : vector<1x8x8xf32>
    "tpu.trace_start"() <{level = 10 : i32, message = "bqk,bkd->bqd"}> : () -> ()
    %cst_42 = arith.constant dense<0.000000e+00> : vector<1x8x8xf32>
    %90 = tpu.matmul %89, %78, %cst_42 {dimension_numbers = #tpu.dot_dimension_numbers<[2], [1], [1], [2], [0, 0, 0, 1, 1, 2], [0], [0]>} : vector<1x8x8xf32>, vector<1x8x8xf32>, vector<1x8x8xf32> -> vector<1x8x8xf32>
    "tpu.trace_stop"() : () -> ()
    %c0_43 = arith.constant 0 : index
    %c0_44 = arith.constant 0 : index
    %c8 = arith.constant 8 : index
    %91 = vector.load %arg20[%c0_43, %c0_44, %c8] : memref<1x8x32xf32, #tpu.memory_space<vmem>>, vector<1x8x8xf32>
    tpu.vector_store %arg20[%c0_43, %c0_44, %c8], %90 {strides = array<i32>} : memref<1x8x32xf32, #tpu.memory_space<vmem>>, vector<1x8x8xf32>,
    %92 = vector.extract_strided_slice %58 {offsets = [0, 0, 16], sizes = [1, 8, 8], strides = [1, 1, 1]} : vector<1x8x32xf32> to vector<1x8x8xf32>
    %93 = vector.extract_strided_slice %59 {offsets = [0, 0, 16], sizes = [1, 8, 8], strides = [1, 1, 1]} : vector<1x8x64xf32> to vector<1x8x8xf32>
    %94 = vector.extract_strided_slice %59 {offsets = [0, 0, 48], sizes = [1, 8, 8], strides = [1, 1, 1]} : vector<1x8x64xf32> to vector<1x8x8xf32>
    "tpu.trace_start"() <{level = 10 : i32, message = "bqd,bkd->bqk"}> : () -> ()
    %cst_45 = arith.constant dense<0.000000e+00> : vector<1x8x8xf32>
    %95 = tpu.matmul %92, %93, %cst_45 {dimension_numbers = #tpu.dot_dimension_numbers<[2], [2], [1], [1], [0, 0, 0, 1, 1, 1], [0], [0]>} : vector<1x8x8xf32>, vector<1x8x8xf32>, vector<1x8x8xf32> -> vector<1x8x8xf32>
    "tpu.trace_stop"() : () -> ()
    %cst_46 = arith.constant dense<0xFF800000> : vector<1x8xf32>
    %96 = vector.multi_reduction <maximumf>, %95, %cst_46 [2] : vector<1x8x8xf32> to vector<1x8xf32>
    %97 = vector.shape_cast %96 : vector<1x8xf32> to vector<1x8x1xf32>
    %98 = vector.broadcast %97 : vector<1x8x1xf32> to vector<1x8x8xf32>
    %99 = arith.subf %95, %98 : vector<1x8x8xf32>
    %100 = math.exp %99 : vector<1x8x8xf32>
    %cst_47 = arith.constant dense<0.000000e+00> : vector<1x8xf32>
    %101 = vector.multi_reduction <add>, %100, %cst_47 [2] : vector<1x8x8xf32> to vector<1x8xf32>
    %102 = vector.shape_cast %101 : vector<1x8xf32> to vector<1x8x1xf32>
    %103 = tpu.reciprocal %102 : vector<1x8x1xf32> -> vector<1x8x1xf32>
    %104 = vector.broadcast %103 : vector<1x8x1xf32> to vector<1x8x8xf32>
    %105 = arith.mulf %100, %104 : vector<1x8x8xf32>
    "tpu.trace_start"() <{level = 10 : i32, message = "bqk,bkd->bqd"}> : () -> ()
    %cst_48 = arith.constant dense<0.000000e+00> : vector<1x8x8xf32>
    %106 = tpu.matmul %105, %94, %cst_48 {dimension_numbers = #tpu.dot_dimension_numbers<[2], [1], [1], [2], [0, 0, 0, 1, 1, 2], [0], [0]>} : vector<1x8x8xf32>, vector<1x8x8xf32>, vector<1x8x8xf32> -> vector<1x8x8xf32>
    "tpu.trace_stop"() : () -> ()
    %c0_49 = arith.constant 0 : index
    %c0_50 = arith.constant 0 : index
    %c16 = arith.constant 16 : index
    %107 = vector.load %arg20[%c0_49, %c0_50, %c16] : memref<1x8x32xf32, #tpu.memory_space<vmem>>, vector<1x8x8xf32>
    tpu.vector_store %arg20[%c0_49, %c0_50, %c16], %106 {strides = array<i32>} : memref<1x8x32xf32, #tpu.memory_space<vmem>>, vector<1x8x8xf32>,
    %108 = vector.extract_strided_slice %58 {offsets = [0, 0, 24], sizes = [1, 8, 8], strides = [1, 1, 1]} : vector<1x8x32xf32> to vector<1x8x8xf32>
    %109 = vector.extract_strided_slice %59 {offsets = [0, 0, 24], sizes = [1, 8, 8], strides = [1, 1, 1]} : vector<1x8x64xf32> to vector<1x8x8xf32>
    %110 = vector.extract_strided_slice %59 {offsets = [0, 0, 56], sizes = [1, 8, 8], strides = [1, 1, 1]} : vector<1x8x64xf32> to vector<1x8x8xf32>
    "tpu.trace_start"() <{level = 10 : i32, message = "bqd,bkd->bqk"}> : () -> ()
    %cst_51 = arith.constant dense<0.000000e+00> : vector<1x8x8xf32>
    %111 = tpu.matmul %108, %109, %cst_51 {dimension_numbers = #tpu.dot_dimension_numbers<[2], [2], [1], [1], [0, 0, 0, 1, 1, 1], [0], [0]>} : vector<1x8x8xf32>, vector<1x8x8xf32>, vector<1x8x8xf32> -> vector<1x8x8xf32>
    "tpu.trace_stop"() : () -> ()
    %cst_52 = arith.constant dense<0xFF800000> : vector<1x8xf32>
    %112 = vector.multi_reduction <maximumf>, %111, %cst_52 [2] : vector<1x8x8xf32> to vector<1x8xf32>
    %113 = vector.shape_cast %112 : vector<1x8xf32> to vector<1x8x1xf32>
    %114 = vector.broadcast %113 : vector<1x8x1xf32> to vector<1x8x8xf32>
    %115 = arith.subf %111, %114 : vector<1x8x8xf32>
    %116 = math.exp %115 : vector<1x8x8xf32>
    %cst_53 = arith.constant dense<0.000000e+00> : vector<1x8xf32>
    %117 = vector.multi_reduction <add>, %116, %cst_53 [2] : vector<1x8x8xf32> to vector<1x8xf32>
    %118 = vector.shape_cast %117 : vector<1x8xf32> to vector<1x8x1xf32>
    %119 = tpu.reciprocal %118 : vector<1x8x1xf32> -> vector<1x8x1xf32>
    %120 = vector.broadcast %119 : vector<1x8x1xf32> to vector<1x8x8xf32>
    %121 = arith.mulf %116, %120 : vector<1x8x8xf32>
    "tpu.trace_start"() <{level = 10 : i32, message = "bqk,bkd->bqd"}> : () -> ()
    %cst_54 = arith.constant dense<0.000000e+00> : vector<1x8x8xf32>
    %122 = tpu.matmul %121, %110, %cst_54 {dimension_numbers = #tpu.dot_dimension_numbers<[2], [1], [1], [2], [0, 0, 0, 1, 1, 2], [0], [0]>} : vector<1x8x8xf32>, vector<1x8x8xf32>, vector<1x8x8xf32> -> vector<1x8x8xf32>
    "tpu.trace_stop"() : () -> ()
    %c0_55 = arith.constant 0 : index
    %c0_56 = arith.constant 0 : index
    %c24 = arith.constant 24 : index
    %123 = vector.load %arg20[%c0_55, %c0_56, %c24] : memref<1x8x32xf32, #tpu.memory_space<vmem>>, vector<1x8x8xf32>
    tpu.vector_store %arg20[%c0_55, %c0_56, %c24], %122 {strides = array<i32>} : memref<1x8x32xf32, #tpu.memory_space<vmem>>, vector<1x8x8xf32>,
    %c0_57 = arith.constant 0 : index
    %c0_58 = arith.constant 0 : index
    %c0_59 = arith.constant 0 : index
    %124 = vector.load %arg20[%c0_57, %c0_58, %c0_59] : memref<1x8x32xf32, #tpu.memory_space<vmem>>, vector<1x8x32xf32>
    %125 = vector.shape_cast %124 : vector<1x8x32xf32> to vector<8x32xf32>
    %c0_60 = arith.constant 0 : index
    %c0_61 = arith.constant 0 : index
    %126 = vector.load %arg11[%c0_60, %c0_61] : memref<32x32xf32, #tpu.memory_space<vmem>>, vector<32x32xf32>
    %cst_62 = arith.constant dense<0.000000e+00> : vector<8x32xf32>
    %127 = tpu.matmul %125, %126, %cst_62 {dimension_numbers = #tpu.dot_dimension_numbers<[1], [0], [0], [1], [0, 0, 1, 1], [], []>} : vector<8x32xf32>, vector<32x32xf32>, vector<8x32xf32> -> vector<8x32xf32>
    %c0_63 = arith.constant 0 : index
    %c0_64 = arith.constant 0 : index
    %128 = vector.load %arg12[%c0_63, %c0_64] : memref<1x32xf32, #tpu.memory_space<vmem>>, vector<1x32xf32>
    %129 = vector.broadcast %128 : vector<1x32xf32> to vector<8x32xf32>
    %130 = arith.addf %127, %129 : vector<8x32xf32>
    %131 = arith.addf %130, %1 : vector<8x32xf32>
    %cst_65 = arith.constant dense<0.000000e+00> : vector<8xf32>
    %132 = vector.multi_reduction <add>, %131, %cst_65 [1] : vector<8x32xf32> to vector<8xf32>
    %133 = vector.shape_cast %132 : vector<8xf32> to vector<8x1xf32>
    %cst_66 = arith.constant 3.200000e+01 : f32
    %134 = vector.broadcast %cst_66 : f32 to vector<8x1xf32>
    %135 = arith.divf %133, %134 : vector<8x1xf32>
    %136 = vector.broadcast %135 : vector<8x1xf32> to vector<8x32xf32>
    %137 = arith.subf %131, %136 : vector<8x32xf32>
    %138 = arith.mulf %137, %137 : vector<8x32xf32>
    %cst_67 = arith.constant dense<0.000000e+00> : vector<8xf32>
    %139 = vector.multi_reduction <add>, %138, %cst_67 [1] : vector<8x32xf32> to vector<8xf32>
    %140 = vector.shape_cast %139 : vector<8xf32> to vector<8x1xf32>
    %cst_68 = arith.constant 3.200000e+01 : f32
    %141 = vector.broadcast %cst_68 : f32 to vector<8x1xf32>
    %142 = arith.divf %140, %141 : vector<8x1xf32>
    %cst_69 = arith.constant 9.99999997E-7 : f32
    %143 = vector.broadcast %cst_69 : f32 to vector<8x1xf32>
    %144 = arith.addf %142, %143 : vector<8x1xf32>
    %145 = math.rsqrt %144 : vector<8x1xf32>
    %146 = vector.broadcast %145 : vector<8x1xf32> to vector<8x32xf32>
    %147 = arith.mulf %137, %146 : vector<8x32xf32>
    %c0_70 = arith.constant 0 : index
    %c0_71 = arith.constant 0 : index
    %148 = vector.load %arg13[%c0_70, %c0_71] : memref<1x32xf32, #tpu.memory_space<vmem>>, vector<1x32xf32>
    %149 = vector.broadcast %148 : vector<1x32xf32> to vector<8x32xf32>
    %150 = arith.mulf %147, %149 : vector<8x32xf32>
    %c0_72 = arith.constant 0 : index
    %c0_73 = arith.constant 0 : index
    %151 = vector.load %arg14[%c0_72, %c0_73] : memref<1x32xf32, #tpu.memory_space<vmem>>, vector<1x32xf32>
    %152 = vector.broadcast %151 : vector<1x32xf32> to vector<8x32xf32>
    %153 = arith.addf %150, %152 : vector<8x32xf32>
    %c0_74 = arith.constant 0 : index
    %c0_75 = arith.constant 0 : index
    %154 = vector.load %arg15[%c0_74, %c0_75] : memref<32x64xf32, #tpu.memory_space<vmem>>, vector<32x64xf32>
    %cst_76 = arith.constant dense<0.000000e+00> : vector<8x64xf32>
    %155 = tpu.matmul %153, %154, %cst_76 {dimension_numbers = #tpu.dot_dimension_numbers<[1], [0], [0], [1], [0, 0, 1, 1], [], []>} : vector<8x32xf32>, vector<32x64xf32>, vector<8x64xf32> -> vector<8x64xf32>
    %c0_77 = arith.constant 0 : index
    %c0_78 = arith.constant 0 : index
    %156 = vector.load %arg16[%c0_77, %c0_78] : memref<1x64xf32, #tpu.memory_space<vmem>>, vector<1x64xf32>
    %157 = vector.broadcast %156 : vector<1x64xf32> to vector<8x64xf32>
    %158 = arith.addf %155, %157 : vector<8x64xf32>
    %cst_79 = arith.constant 5.000000e-01 : f32
    %159 = vector.broadcast %cst_79 : f32 to vector<8x64xf32>
    %160 = arith.mulf %159, %158 : vector<8x64xf32>
    %cst_80 = arith.constant 0.707106769 : f32
    %161 = vector.broadcast %cst_80 : f32 to vector<8x64xf32>
    %162 = arith.mulf %158, %161 : vector<8x64xf32>
    %163 = math.erf %162 : vector<8x64xf32>
    %cst_81 = arith.constant 1.000000e+00 : f32
    %164 = vector.broadcast %cst_81 : f32 to vector<8x64xf32>
    %165 = arith.addf %164, %163 : vector<8x64xf32>
    %166 = arith.mulf %160, %165 : vector<8x64xf32>
    %c0_82 = arith.constant 0 : index
    %c0_83 = arith.constant 0 : index
    %167 = vector.load %arg17[%c0_82, %c0_83] : memref<64x32xf32, #tpu.memory_space<vmem>>, vector<64x32xf32>
    %cst_84 = arith.constant dense<0.000000e+00> : vector<8x32xf32>
    %168 = tpu.matmul %166, %167, %cst_84 {dimension_numbers = #tpu.dot_dimension_numbers<[1], [0], [0], [1], [0, 0, 1, 1], [], []>} : vector<8x64xf32>, vector<64x32xf32>, vector<8x32xf32> -> vector<8x32xf32>
    %c0_85 = arith.constant 0 : index
    %c0_86 = arith.constant 0 : index
    %169 = vector.load %arg18[%c0_85, %c0_86] : memref<1x32xf32, #tpu.memory_space<vmem>>, vector<1x32xf32>
    %170 = vector.broadcast %169 : vector<1x32xf32> to vector<8x32xf32>
    %171 = arith.addf %168, %170 : vector<8x32xf32>
    %172 = arith.addf %131, %171 : vector<8x32xf32>
    %173 = vector.shape_cast %172 : vector<8x32xf32> to vector<1x8x32xf32>
    %c0_87 = arith.constant 0 : index
    %c0_88 = arith.constant 0 : index
    %c0_89 = arith.constant 0 : index
    %174 = vector.load %arg19[%c0_87, %c0_88, %c0_89] : memref<1x8x32xf32, #tpu.memory_space<vmem>>, vector<1x8x32xf32>
    tpu.vector_store %arg19[%c0_87, %c0_88, %c0_89], %173 {strides = array<i32>} : memref<1x8x32xf32, #tpu.memory_space<vmem>>, vector<1x8x32xf32>,
    return
  }
  func.func @transform_0(%arg0: i32) -> (i32, i32, i32) {
    %c0_i32 = arith.constant 0 : i32
    %c0_i32_0 = arith.constant 0 : i32
    %c0_i32_1 = arith.constant 0 : i32
    return %arg0, %c0_i32, %c0_i32_0 : i32, i32, i32
  }
  func.func @transform_1(%arg0: i32) -> (i32, i32, i32) {
    %c0_i32 = arith.constant 0 : i32
    %c0_i32_0 = arith.constant 0 : i32
    %c0_i32_1 = arith.constant 0 : i32
    return %arg0, %c0_i32, %c0_i32_0 : i32, i32, i32
  }
  func.func @transform_2(%arg0: i32) -> (i32, i32) {
    %c0_i32 = arith.constant 0 : i32
    %c0_i32_0 = arith.constant 0 : i32
    %c0_i32_1 = arith.constant 0 : i32
    return %c0_i32, %c0_i32_0 : i32, i32
  }
  func.func @transform_3(%arg0: i32) -> (i32, i32) {
    %c0_i32 = arith.constant 0 : i32
    %c0_i32_0 = arith.constant 0 : i32
    %c0_i32_1 = arith.constant 0 : i32
    return %c0_i32, %c0_i32_0 : i32, i32
  }
  func.func @transform_4(%arg0: i32) -> (i32, i32) {
    %c0_i32 = arith.constant 0 : i32
    %c0_i32_0 = arith.constant 0 : i32
    %c0_i32_1 = arith.constant 0 : i32
    return %c0_i32, %c0_i32_0 : i32, i32
  }
  func.func @transform_5(%arg0: i32) -> (i32, i32) {
    %c0_i32 = arith.constant 0 : i32
    %c0_i32_0 = arith.constant 0 : i32
    %c0_i32_1 = arith.constant 0 : i32
    return %c0_i32, %c0_i32_0 : i32, i32
  }
  func.func @transform_6(%arg0: i32) -> (i32, i32) {
    %c0_i32 = arith.constant 0 : i32
    %c0_i32_0 = arith.constant 0 : i32
    %c0_i32_1 = arith.constant 0 : i32
    return %c0_i32, %c0_i32_0 : i32, i32
  }
  func.func @transform_7(%arg0: i32) -> (i32, i32) {
    %c0_i32 = arith.constant 0 : i32
    %c0_i32_0 = arith.constant 0 : i32
    %c0_i32_1 = arith.constant 0 : i32
    return %c0_i32, %c0_i32_0 : i32, i32
  }
  func.func @transform_8(%arg0: i32) -> (i32, i32) {
    %c0_i32 = arith.constant 0 : i32
    %c0_i32_0 = arith.constant 0 : i32
    %c0_i32_1 = arith.constant 0 : i32
    return %c0_i32, %c0_i32_0 : i32, i32
  }
  func.func @transform_9(%arg0: i32) -> (i32, i32) {
    %c0_i32 = arith.constant 0 : i32
    %c0_i32_0 = arith.constant 0 : i32
    %c0_i32_1 = arith.constant 0 : i32
    return %c0_i32, %c0_i32_0 : i32, i32
  }
  func.func @transform_10(%arg0: i32) -> (i32, i32) {
    %c0_i32 = arith.constant 0 : i32
    %c0_i32_0 = arith.constant 0 : i32
    %c0_i32_1 = arith.constant 0 : i32
    return %c0_i32, %c0_i32_0 : i32, i32
  }
  func.func @transform_11(%arg0: i32) -> (i32, i32) {
    %c0_i32 = arith.constant 0 : i32
    %c0_i32_0 = arith.constant 0 : i32
    %c0_i32_1 = arith.constant 0 : i32
    return %c0_i32, %c0_i32_0 : i32, i32
  }
  func.func @transform_12(%arg0: i32) -> (i32, i32) {
    %c0_i32 = arith.constant 0 : i32
    %c0_i32_0 = arith.constant 0 : i32
    %c0_i32_1 = arith.constant 0 : i32
    return %c0_i32, %c0_i32_0 : i32, i32
  }
  func.func @transform_13(%arg0: i32) -> (i32, i32) {
    %c0_i32 = arith.constant 0 : i32
    %c0_i32_0 = arith.constant 0 : i32
    %c0_i32_1 = arith.constant 0 : i32
    return %c0_i32, %c0_i32_0 : i32, i32
  }
  func.func @transform_14(%arg0: i32) -> (i32, i32) {
    %c0_i32 = arith.constant 0 : i32
    %c0_i32_0 = arith.constant 0 : i32
    %c0_i32_1 = arith.constant 0 : i32
    return %c0_i32, %c0_i32_0 : i32, i32
  }
  func.func @transform_15(%arg0: i32) -> (i32, i32) {
    %c0_i32 = arith.constant 0 : i32
    %c0_i32_0 = arith.constant 0 : i32
    %c0_i32_1 = arith.constant 0 : i32
    return %c0_i32, %c0_i32_0 : i32, i32
  }
  func.func @transform_16(%arg0: i32) -> (i32, i32) {
    %c0_i32 = arith.constant 0 : i32
    %c0_i32_0 = arith.constant 0 : i32
    %c0_i32_1 = arith.constant 0 : i32
    return %c0_i32, %c0_i32_0 : i32, i32
  }
  func.func @transform_17(%arg0: i32) -> (i32, i32) {
    %c0_i32 = arith.constant 0 : i32
    %c0_i32_0 = arith.constant 0 : i32
    %c0_i32_1 = arith.constant 0 : i32
    return %c0_i32, %c0_i32_0 : i32, i32
  }
  func.func @transform_18(%arg0: i32) -> (i32, i32, i32) {
    %c0_i32 = arith.constant 0 : i32
    %c0_i32_0 = arith.constant 0 : i32
    %c0_i32_1 = arith.constant 0 : i32
    return %arg0, %c0_i32, %c0_i32_0 : i32, i32, i32
  }
}

</mosaic_0001>

<llo_original>
// kernel: tpu_custom_call.1
$region0: #{tpu_custom_call.1}
  #allocation0 [shape = 'u32[]', space=smem, size = 0x4, offset = 0x4, fixed_abs, tag = 'smem constant byte address 0x4 - core index']
  #allocation1 [shape = 'u32[72,128]{1,0:T(1,128)}', space=vmem, size = 0x9000, scoped, tag = 'internal scratch']
  #allocation2 [shape = 'f32[1,8,32]{2,1,0:T(8,128)}', space=vmem, size = 0x1000, scoped, tag = 'scratch operand']
  %s0 = inlined_call_operand.hbm [shape: f32[2,8,32], index: 0, kind: input, shape index: {}]
  %s1 = inlined_call_operand.hbm [shape: f32[2,8,32], index: 1, kind: input, shape index: {}]
  %s2 = inlined_call_operand.vmem [shape: f32[1,32], index: 2, kind: input, shape index: {}]
  %s3 = inlined_call_operand.hbm [shape: f32[1,32], index: 3, kind: input, shape index: {}]
  %s4 = inlined_call_operand.vmem [shape: f32[1,32], index: 4, kind: input, shape index: {}]
  %s5 = inlined_call_operand.vmem [shape: f32[1,32], index: 5, kind: input, shape index: {}]
  %s6 = inlined_call_operand.vmem [shape: f32[32,32], index: 6, kind: input, shape index: {}]
  %s7 = inlined_call_operand.vmem [shape: f32[1,32], index: 7, kind: input, shape index: {}]
  %s8 = inlined_call_operand.vmem [shape: f32[32,64], index: 8, kind: input, shape index: {}]
  %s9 = inlined_call_operand.vmem [shape: f32[1,64], index: 9, kind: input, shape index: {}]
  %s10 = inlined_call_operand.vmem [shape: f32[32,32], index: 10, kind: input, shape index: {}]
  %s11 = inlined_call_operand.vmem [shape: f32[1,32], index: 11, kind: input, shape index: {}]
  %s12 = inlined_call_operand.vmem [shape: f32[1,32], index: 12, kind: input, shape index: {}]
  %s13 = inlined_call_operand.vmem [shape: f32[1,32], index: 13, kind: input, shape index: {}]
  %s14 = inlined_call_operand.hbm [shape: f32[32,64], index: 14, kind: input, shape index: {}]
  %s15 = inlined_call_operand.vmem [shape: f32[1,64], index: 15, kind: input, shape index: {}]
  %s16 = inlined_call_operand.vmem [shape: f32[64,32], index: 16, kind: input, shape index: {}]
  %s17 = inlined_call_operand.vmem [shape: f32[1,32], index: 17, kind: input, shape index: {}]
  %s18 = inlined_call_operand.hbm [shape: f32[2,8,32], index: 18, kind: output, shape index: {}]
  %s19 = sld [smem:[#allocation0]]
  $region121: #{tpu_custom_call.1} parent=0
    _
  %s21 = ssub.s32 1, %s19
  %s22 = scalar_select 0, %s21, %s19
  $region1: #{tpu_custom_call.1} parent=0
    #allocation3 [shape = 'u8[8192]{0}', space=vmem, size = 0x2000, scoped, tag = 'input window, operand 0']
    #allocation4 [shape = 's32[2]{0}', space=sflag, size = 0x8, scoped, tag = 'scoped memory for tpu_custom_call.1']
    #allocation5 [shape = 's32[2]{0}', space=sflag, size = 0x8, scoped, tag = 'scoped memory for tpu_custom_call.1']
    #allocation6 [shape = 'u8[8192]{0}', space=vmem, size = 0x2000, scoped, tag = 'input window, operand 1']
    #allocation7 [shape = 's32[2]{0}', space=sflag, size = 0x8, scoped, tag = 'scoped memory for tpu_custom_call.1']
    #allocation8 [shape = 'u8[512]{0}', space=vmem, size = 0x400, scoped, tag = 'input window, operand 3, single buffered']
    #allocation9 [shape = 'u8[16384]{0}', space=vmem, size = 0x4000, scoped, tag = 'input window, operand 14, single buffered']
    #allocation10 [shape = 's32[1]{0}', space=sflag, size = 0x4, scoped, tag = 'scoped memory for tpu_custom_call.1']
    #allocation11 [shape = 'u8[8192]{0}', space=vmem, size = 0x2000, scoped, tag = 'output window, operand 0']
    %23 = vsyncpa [#allocation4], 0
    %s24 = scalar_lea.sflag [#allocation4], 1
    %25 = vsyncpa %s24, 0
    %26 = vsyncpa [#allocation7], 0
    %s27 = scalar_lea.sflag [#allocation7], 1
    %28 = vsyncpa %s27, 0
    %29 = vsyncpa [#allocation10], 0
    %30 = vsyncpa [#allocation5], 0
    %s31 = scalar_lea.sflag [#allocation5], 1
    %32 = vsyncpa %s31, 0
    loop: start=0, step=1, limit=4
    $region2: #{tpu_custom_call.1} parent=1 // loop_pre_header
      _
    $region3: #{tpu_custom_call.1} parent=1 // loop_header
      %s34 = sphi 0, %s38
      %p35 = scmp.ge.s32.totalorder %s34, 4
      %s44 = sphi 0, %s46
      %s47 = sphi 0, %s44
      %s48 = sphi 0, %s47
      %s64 = sphi 0, %s48
      %s70 = sphi 0, %s72
      %s73 = sphi 0, %s70
      %s74 = sphi 0, %s73
      %s90 = sphi 0, %s74
      %s94 = sphi 0, %s94
      %s96 = sphi 0, %s94
      %s97 = sphi 0, %s96
      %s111 = sphi 0, %s97
      %s115 = sphi 0, %s115
      %s117 = sphi 0, %s115
      %s118 = sphi 0, %s117
      %s132 = sphi 0, %s118
      %s136 = sphi 0, %s136
      %s138 = sphi 0, %s136
      %s139 = sphi 0, %s138
      %s153 = sphi 0, %s139
      %s157 = sphi 0, %s157
      %s159 = sphi 0, %s157
      %s160 = sphi 0, %s159
      %s174 = sphi 0, %s160
      %s178 = sphi 0, %s178
      %s180 = sphi 0, %s178
      %s181 = sphi 0, %s180
      %s195 = sphi 0, %s181
      %s199 = sphi 0, %s199
      %s201 = sphi 0, %s199
      %s202 = sphi 0, %s201
      %s216 = sphi 0, %s202
      %s220 = sphi 0, %s220
      %s222 = sphi 0, %s220
      %s223 = sphi 0, %s222
      %s237 = sphi 0, %s223
      %s241 = sphi 0, %s241
      %s243 = sphi 0, %s241
      %s244 = sphi 0, %s243
      %s258 = sphi 0, %s244
      %s262 = sphi 0, %s262
      %s264 = sphi 0, %s262
      %s265 = sphi 0, %s264
      %s279 = sphi 0, %s265
      %s283 = sphi 0, %s283
      %s285 = sphi 0, %s283
      %s286 = sphi 0, %s285
      %s300 = sphi 0, %s286
      %s304 = sphi 0, %s304
      %s306 = sphi 0, %s304
      %s307 = sphi 0, %s306
      %s321 = sphi 0, %s307
      %s325 = sphi 0, %s325
      %s327 = sphi 0, %s325
      %s328 = sphi 0, %s327
      %s342 = sphi 0, %s328
      %s346 = sphi 0, %s346
      %s348 = sphi 0, %s346
      %s349 = sphi 0, %s348
      %s363 = sphi 0, %s349
      %s367 = sphi 0, %s367
      %s369 = sphi 0, %s367
      %s370 = sphi 0, %s369
      %s384 = sphi 0, %s370
      %s388 = sphi 0, %s388
      %s390 = sphi 0, %s388
      %s391 = sphi 0, %s390
      %s405 = sphi 0, %s391
      %s409 = sphi 0, %s409
      %s411 = sphi 0, %s409
      %s412 = sphi 0, %s411
      %s426 = sphi 0, %s412
      %s432 = sphi 0, %s434
      %s435 = sphi 0, %s432
      %s436 = sphi 0, %s435
      %s452 = sphi 0, %s436
    $region4: #{tpu_custom_call.1} parent=1 // loop_header_branch
      %37 = sbr.rel (%p35) target = $region8
    $region5: #{tpu_custom_call.1} parent=1 // loop_body
      %s39 = ssub.s32 %s34, 1
      %s40 = ssub.s32 %s34, 2
      %s41 = sadd.s32 %s34, 1
      %s42 = ssub.s32 %s34, %s41
      %p43 = scmp.eq.s32.totalorder %s42, 0
      %s45 = sadd.s32 %s44, 1
      %s46 = scalar_select %p43, %s44, %s45
      %p49 = pneg %p43
      %p50 = scmp.eq.s32.totalorder %s34, 1
      %p51 = por %p49, %p50
      %p52 = scmp.ne.s32.totalorder %s44, %s47
      %p53 = scmp.eq.s32.totalorder %s34, 0
      %p54 = por %p52, %p53
      %p55 = scmp.ne.s32.totalorder %s44, %s47
      %p56 = scmp.eq.s32.totalorder %s39, 1
      %p57 = por %p55, %p56
      %p58 = scmp.ne.s32.totalorder %s47, %s48
      %p59 = scmp.eq.s32.totalorder %s39, 0
      %p60 = por %p58, %p59
      %p61 = scmp.ne.s32.totalorder %s47, %s48
      %p62 = scmp.eq.s32.totalorder %s40, 1
      %p63 = por %p61, %p62
      %p65 = scmp.ne.s32.totalorder %s48, %s64
      %p66 = scmp.eq.s32.totalorder %s40, 0
      %p67 = por %p65, %p66
      %s68 = ssub.s32 %s34, %s41
      %p69 = scmp.eq.s32.totalorder %s68, 0
      %s71 = sadd.s32 %s70, 1
      %s72 = scalar_select %p69, %s70, %s71
      %p75 = pneg %p69
      %p76 = scmp.eq.s32.totalorder %s34, 1
      %p77 = por %p75, %p76
      %p78 = scmp.ne.s32.totalorder %s70, %s73
      %p79 = scmp.eq.s32.totalorder %s34, 0
      %p80 = por %p78, %p79
      %p81 = scmp.ne.s32.totalorder %s70, %s73
      %p82 = scmp.eq.s32.totalorder %s39, 1
      %p83 = por %p81, %p82
      %p84 = scmp.ne.s32.totalorder %s73, %s74
      %p85 = scmp.eq.s32.totalorder %s39, 0
      %p86 = por %p84, %p85
      %p87 = scmp.ne.s32.totalorder %s73, %s74
      %p88 = scmp.eq.s32.totalorder %s40, 1
      %p89 = por %p87, %p88
      %p91 = scmp.ne.s32.totalorder %s74, %s90
      %p92 = scmp.eq.s32.totalorder %s40, 0
      %p93 = por %p91, %p92
      %s95 = sadd.s32 %s94, 1
      %p98 = scmp.eq.s32.totalorder %s34, 1
      %p99 = scmp.ne.s32.totalorder %s94, %s96
      %p100 = scmp.eq.s32.totalorder %s34, 0
      %p101 = por %p99, %p100
      %p102 = scmp.ne.s32.totalorder %s94, %s96
      %p103 = scmp.eq.s32.totalorder %s39, 1
      %p104 = por %p102, %p103
      %p105 = scmp.ne.s32.totalorder %s96, %s97
      %p106 = scmp.eq.s32.totalorder %s39, 0
      %p107 = por %p105, %p106
      %p108 = scmp.ne.s32.totalorder %s96, %s97
      %p109 = scmp.eq.s32.totalorder %s40, 1
      %p110 = por %p108, %p109
      %p112 = scmp.ne.s32.totalorder %s97, %s111
      %p113 = scmp.eq.s32.totalorder %s40, 0
      %p114 = por %p112, %p113
      %s116 = sadd.s32 %s115, 1
      %p119 = scmp.eq.s32.totalorder %s34, 1
      %p120 = scmp.ne.s32.totalorder %s115, %s117
      %p121 = scmp.eq.s32.totalorder %s34, 0
      %p122 = por %p120, %p121
      %p123 = scmp.ne.s32.totalorder %s115, %s117
      %p124 = scmp.eq.s32.totalorder %s39, 1
      %p125 = por %p123, %p124
      %p126 = scmp.ne.s32.totalorder %s117, %s118
      %p127 = scmp.eq.s32.totalorder %s39, 0
      %p128 = por %p126, %p127
      %p129 = scmp.ne.s32.totalorder %s117, %s118
      %p130 = scmp.eq.s32.totalorder %s40, 1
      %p131 = por %p129, %p130
      %p133 = scmp.ne.s32.totalorder %s118, %s132
      %p134 = scmp.eq.s32.totalorder %s40, 0
      %p135 = por %p133, %p134
      %s137 = sadd.s32 %s136, 1
      %p140 = scmp.eq.s32.totalorder %s34, 1
      %p141 = scmp.ne.s32.totalorder %s136, %s138
      %p142 = scmp.eq.s32.totalorder %s34, 0
      %p143 = por %p141, %p142
      %p144 = scmp.ne.s32.totalorder %s136, %s138
      %p145 = scmp.eq.s32.totalorder %s39, 1
      %p146 = por %p144, %p145
      %p147 = scmp.ne.s32.totalorder %s138, %s139
      %p148 = scmp.eq.s32.totalorder %s39, 0
      %p149 = por %p147, %p148
      %p150 = scmp.ne.s32.totalorder %s138, %s139
      %p151 = scmp.eq.s32.totalorder %s40, 1
      %p152 = por %p150, %p151
      %p154 = scmp.ne.s32.totalorder %s139, %s153
      %p155 = scmp.eq.s32.totalorder %s40, 0
      %p156 = por %p154, %p155
      %s158 = sadd.s32 %s157, 1
      %p161 = scmp.eq.s32.totalorder %s34, 1
      %p162 = scmp.ne.s32.totalorder %s157, %s159
      %p163 = scmp.eq.s32.totalorder %s34, 0
      %p164 = por %p162, %p163
      %p165 = scmp.ne.s32.totalorder %s157, %s159
      %p166 = scmp.eq.s32.totalorder %s39, 1
      %p167 = por %p165, %p166
      %p168 = scmp.ne.s32.totalorder %s159, %s160
      %p169 = scmp.eq.s32.totalorder %s39, 0
      %p170 = por %p168, %p169
      %p171 = scmp.ne.s32.totalorder %s159, %s160
      %p172 = scmp.eq.s32.totalorder %s40, 1
      %p173 = por %p171, %p172
      %p175 = scmp.ne.s32.totalorder %s160, %s174
      %p176 = scmp.eq.s32.totalorder %s40, 0
      %p177 = por %p175, %p176
      %s179 = sadd.s32 %s178, 1
      %p182 = scmp.eq.s32.totalorder %s34, 1
      %p183 = scmp.ne.s32.totalorder %s178, %s180
      %p184 = scmp.eq.s32.totalorder %s34, 0
      %p185 = por %p183, %p184
      %p186 = scmp.ne.s32.totalorder %s178, %s180
      %p187 = scmp.eq.s32.totalorder %s39, 1
      %p188 = por %p186, %p187
      %p189 = scmp.ne.s32.totalorder %s180, %s181
      %p190 = scmp.eq.s32.totalorder %s39, 0
      %p191 = por %p189, %p190
      %p192 = scmp.ne.s32.totalorder %s180, %s181
      %p193 = scmp.eq.s32.totalorder %s40, 1
      %p194 = por %p192, %p193
      %p196 = scmp.ne.s32.totalorder %s181, %s195
      %p197 = scmp.eq.s32.totalorder %s40, 0
      %p198 = por %p196, %p197
      %s200 = sadd.s32 %s199, 1
      %p203 = scmp.eq.s32.totalorder %s34, 1
      %p204 = scmp.ne.s32.totalorder %s199, %s201
      %p205 = scmp.eq.s32.totalorder %s34, 0
      %p206 = por %p204, %p205
      %p207 = scmp.ne.s32.totalorder %s199, %s201
      %p208 = scmp.eq.s32.totalorder %s39, 1
      %p209 = por %p207, %p208
      %p210 = scmp.ne.s32.totalorder %s201, %s202
      %p211 = scmp.eq.s32.totalorder %s39, 0
      %p212 = por %p210, %p211
      %p213 = scmp.ne.s32.totalorder %s201, %s202
      %p214 = scmp.eq.s32.totalorder %s40, 1
      %p215 = por %p213, %p214
      %p217 = scmp.ne.s32.totalorder %s202, %s216
      %p218 = scmp.eq.s32.totalorder %s40, 0
      %p219 = por %p217, %p218
      %s221 = sadd.s32 %s220, 1
      %p224 = scmp.eq.s32.totalorder %s34, 1
      %p225 = scmp.ne.s32.totalorder %s220, %s222
      %p226 = scmp.eq.s32.totalorder %s34, 0
      %p227 = por %p225, %p226
      %p228 = scmp.ne.s32.totalorder %s220, %s222
      %p229 = scmp.eq.s32.totalorder %s39, 1
      %p230 = por %p228, %p229
      %p231 = scmp.ne.s32.totalorder %s222, %s223
      %p232 = scmp.eq.s32.totalorder %s39, 0
      %p233 = por %p231, %p232
      %p234 = scmp.ne.s32.totalorder %s222, %s223
      %p235 = scmp.eq.s32.totalorder %s40, 1
      %p236 = por %p234, %p235
      %p238 = scmp.ne.s32.totalorder %s223, %s237
      %p239 = scmp.eq.s32.totalorder %s40, 0
      %p240 = por %p238, %p239
      %s242 = sadd.s32 %s241, 1
      %p245 = scmp.eq.s32.totalorder %s34, 1
      %p246 = scmp.ne.s32.totalorder %s241, %s243
      %p247 = scmp.eq.s32.totalorder %s34, 0
      %p248 = por %p246, %p247
      %p249 = scmp.ne.s32.totalorder %s241, %s243
      %p250 = scmp.eq.s32.totalorder %s39, 1
      %p251 = por %p249, %p250
      %p252 = scmp.ne.s32.totalorder %s243, %s244
      %p253 = scmp.eq.s32.totalorder %s39, 0
      %p254 = por %p252, %p253
      %p255 = scmp.ne.s32.totalorder %s243, %s244
      %p256 = scmp.eq.s32.totalorder %s40, 1
      %p257 = por %p255, %p256
      %p259 = scmp.ne.s32.totalorder %s244, %s258
      %p260 = scmp.eq.s32.totalorder %s40, 0
      %p261 = por %p259, %p260
      %s263 = sadd.s32 %s262, 1
      %p266 = scmp.eq.s32.totalorder %s34, 1
      %p267 = scmp.ne.s32.totalorder %s262, %s264
      %p268 = scmp.eq.s32.totalorder %s34, 0
      %p269 = por %p267, %p268
      %p270 = scmp.ne.s32.totalorder %s262, %s264
      %p271 = scmp.eq.s32.totalorder %s39, 1
      %p272 = por %p270, %p271
      %p273 = scmp.ne.s32.totalorder %s264, %s265
      %p274 = scmp.eq.s32.totalorder %s39, 0
      %p275 = por %p273, %p274
      %p276 = scmp.ne.s32.totalorder %s264, %s265
      %p277 = scmp.eq.s32.totalorder %s40, 1
      %p278 = por %p276, %p277
      %p280 = scmp.ne.s32.totalorder %s265, %s279
      %p281 = scmp.eq.s32.totalorder %s40, 0
      %p282 = por %p280, %p281
      %s284 = sadd.s32 %s283, 1
      %p287 = scmp.eq.s32.totalorder %s34, 1
      %p288 = scmp.ne.s32.totalorder %s283, %s285
      %p289 = scmp.eq.s32.totalorder %s34, 0
      %p290 = por %p288, %p289
      %p291 = scmp.ne.s32.totalorder %s283, %s285
      %p292 = scmp.eq.s32.totalorder %s39, 1
      %p293 = por %p291, %p292
      %p294 = scmp.ne.s32.totalorder %s285, %s286
      %p295 = scmp.eq.s32.totalorder %s39, 0
      %p296 = por %p294, %p295
      %p297 = scmp.ne.s32.totalorder %s285, %s286
      %p298 = scmp.eq.s32.totalorder %s40, 1
      %p299 = por %p297, %p298
      %p301 = scmp.ne.s32.totalorder %s286, %s300
      %p302 = scmp.eq.s32.totalorder %s40, 0
      %p303 = por %p301, %p302
      %s305 = sadd.s32 %s304, 1
      %p308 = scmp.eq.s32.totalorder %s34, 1
      %p309 = scmp.ne.s32.totalorder %s304, %s306
      %p310 = scmp.eq.s32.totalorder %s34, 0
      %p311 = por %p309, %p310
      %p312 = scmp.ne.s32.totalorder %s304, %s306
      %p313 = scmp.eq.s32.totalorder %s39, 1
      %p314 = por %p312, %p313
      %p315 = scmp.ne.s32.totalorder %s306, %s307
      %p316 = scmp.eq.s32.totalorder %s39, 0
      %p317 = por %p315, %p316
      %p318 = scmp.ne.s32.totalorder %s306, %s307
      %p319 = scmp.eq.s32.totalorder %s40, 1
      %p320 = por %p318, %p319
      %p322 = scmp.ne.s32.totalorder %s307, %s321
      %p323 = scmp.eq.s32.totalorder %s40, 0
      %p324 = por %p322, %p323
      %s326 = sadd.s32 %s325, 1
      %p329 = scmp.eq.s32.totalorder %s34, 1
      %p330 = scmp.ne.s32.totalorder %s325, %s327
      %p331 = scmp.eq.s32.totalorder %s34, 0
      %p332 = por %p330, %p331
      %p333 = scmp.ne.s32.totalorder %s325, %s327
      %p334 = scmp.eq.s32.totalorder %s39, 1
      %p335 = por %p333, %p334
      %p336 = scmp.ne.s32.totalorder %s327, %s328
      %p337 = scmp.eq.s32.totalorder %s39, 0
      %p338 = por %p336, %p337
      %p339 = scmp.ne.s32.totalorder %s327, %s328
      %p340 = scmp.eq.s32.totalorder %s40, 1
      %p341 = por %p339, %p340
      %p343 = scmp.ne.s32.totalorder %s328, %s342
      %p344 = scmp.eq.s32.totalorder %s40, 0
      %p345 = por %p343, %p344
      %s347 = sadd.s32 %s346, 1
      %p350 = scmp.eq.s32.totalorder %s34, 1
      %p351 = scmp.ne.s32.totalorder %s346, %s348
      %p352 = scmp.eq.s32.totalorder %s34, 0
      %p353 = por %p351, %p352
      %p354 = scmp.ne.s32.totalorder %s346, %s348
      %p355 = scmp.eq.s32.totalorder %s39, 1
      %p356 = por %p354, %p355
      %p357 = scmp.ne.s32.totalorder %s348, %s349
      %p358 = scmp.eq.s32.totalorder %s39, 0
      %p359 = por %p357, %p358
      %p360 = scmp.ne.s32.totalorder %s348, %s349
      %p361 = scmp.eq.s32.totalorder %s40, 1
      %p362 = por %p360, %p361
      %p364 = scmp.ne.s32.totalorder %s349, %s363
      %p365 = scmp.eq.s32.totalorder %s40, 0
      %p366 = por %p364, %p365
      %s368 = sadd.s32 %s367, 1
      %p371 = scmp.eq.s32.totalorder %s34, 1
      %p372 = scmp.ne.s32.totalorder %s367, %s369
      %p373 = scmp.eq.s32.totalorder %s34, 0
      %p374 = por %p372, %p373
      %p375 = scmp.ne.s32.totalorder %s367, %s369
      %p376 = scmp.eq.s32.totalorder %s39, 1
      %p377 = por %p375, %p376
      %p378 = scmp.ne.s32.totalorder %s369, %s370
      %p379 = scmp.eq.s32.totalorder %s39, 0
      %p380 = por %p378, %p379
      %p381 = scmp.ne.s32.totalorder %s369, %s370
      %p382 = scmp.eq.s32.totalorder %s40, 1
      %p383 = por %p381, %p382
      %p385 = scmp.ne.s32.totalorder %s370, %s384
      %p386 = scmp.eq.s32.totalorder %s40, 0
      %p387 = por %p385, %p386
      %s389 = sadd.s32 %s388, 1
      %p392 = scmp.eq.s32.totalorder %s34, 1
      %p393 = scmp.ne.s32.totalorder %s388, %s390
      %p394 = scmp.eq.s32.totalorder %s34, 0
      %p395 = por %p393, %p394
      %p396 = scmp.ne.s32.totalorder %s388, %s390
      %p397 = scmp.eq.s32.totalorder %s39, 1
      %p398 = por %p396, %p397
      %p399 = scmp.ne.s32.totalorder %s390, %s391
      %p400 = scmp.eq.s32.totalorder %s39, 0
      %p401 = por %p399, %p400
      %p402 = scmp.ne.s32.totalorder %s390, %s391
      %p403 = scmp.eq.s32.totalorder %s40, 1
      %p404 = por %p402, %p403
      %p406 = scmp.ne.s32.totalorder %s391, %s405
      %p407 = scmp.eq.s32.totalorder %s40, 0
      %p408 = por %p406, %p407
      %s410 = sadd.s32 %s409, 1
      %p413 = scmp.eq.s32.totalorder %s34, 1
      %p414 = scmp.ne.s32.totalorder %s409, %s411
      %p415 = scmp.eq.s32.totalorder %s34, 0
      %p416 = por %p414, %p415
      %p417 = scmp.ne.s32.totalorder %s409, %s411
      %p418 = scmp.eq.s32.totalorder %s39, 1
      %p419 = por %p417, %p418
      %p420 = scmp.ne.s32.totalorder %s411, %s412
      %p421 = scmp.eq.s32.totalorder %s39, 0
      %p422 = por %p420, %p421
      %p423 = scmp.ne.s32.totalorder %s411, %s412
      %p424 = scmp.eq.s32.totalorder %s40, 1
      %p425 = por %p423, %p424
      %p427 = scmp.ne.s32.totalorder %s412, %s426
      %p428 = scmp.eq.s32.totalorder %s40, 0
      %p429 = por %p427, %p428
      %s430 = ssub.s32 %s34, %s41
      %p431 = scmp.eq.s32.totalorder %s430, 0
      %s433 = sadd.s32 %s432, 1
      %s434 = scalar_select %p431, %s432, %s433
      %p437 = pneg %p431
      %p438 = scmp.eq.s32.totalorder %s34, 1
      %p439 = por %p437, %p438
      %p440 = scmp.ne.s32.totalorder %s432, %s435
      %p441 = scmp.eq.s32.totalorder %s34, 0
      %p442 = por %p440, %p441
      %p443 = scmp.ne.s32.totalorder %s432, %s435
      %p444 = scmp.eq.s32.totalorder %s39, 1
      %p445 = por %p443, %p444
      %p446 = scmp.ne.s32.totalorder %s435, %s436
      %p447 = scmp.eq.s32.totalorder %s39, 0
      %p448 = por %p446, %p447
      %p449 = scmp.ne.s32.totalorder %s435, %s436
      %p450 = scmp.eq.s32.totalorder %s40, 1
      %p451 = por %p449, %p450
      %p453 = scmp.ne.s32.totalorder %s436, %s452
      %p454 = scmp.eq.s32.totalorder %s40, 0
      %p455 = por %p453, %p454
      %p456 = scmp.le.s32.totalorder 1, %s34
      %p457 = scmp.lt.s32.totalorder %s34, 3
      %p458 = pnand %p456, %p457
      %p459 = pneg %p458
      // Predicated region
      $region9: #{tpu_custom_call.1} parent=5 // pred_check
        _
      $region10: #{tpu_custom_call.1} parent=5 // pred_check_branch
        %461 = sbr.rel (%p458) target = $region12
      $region11: #{tpu_custom_call.1} parent=5 // pred_region
        %s462 = ssub.s32 %s34, 1
        // Predicated region
        $region13: #{tpu_custom_call.1} parent=11 // pred_check
          %p463 = pneg %p107
        $region14: #{tpu_custom_call.1} parent=11 // pred_check_branch
          %465 = sbr.rel (%p463) target = $region16
        $region15: #{tpu_custom_call.1} parent=11 // pred_region
          _
        $region16: #{tpu_custom_call.1} parent=11 // pred_fallthru
          _
        // Predicated region
        $region17: #{tpu_custom_call.1} parent=11 // pred_check
          %p466 = pneg %p128
        $region18: #{tpu_custom_call.1} parent=11 // pred_check_branch
          %468 = sbr.rel (%p466) target = $region20
        $region19: #{tpu_custom_call.1} parent=11 // pred_region
          %470 = vsyncadd [#allocation7], 0
          %s472 = sshll.u32 %s3, 4
          %s473 = int_to_ptr.hbm [resolvable:$true] %s472
          %s474 = sshll.u32 [#allocation8], 4
          %s475 = int_to_ptr.vmem [resolvable:$true] %s474
          %477 = dma.hbm_to_vmem [thread:$0]  %s473, 16, %s475, [#allocation7]
        $region20: #{tpu_custom_call.1} parent=11 // pred_fallthru
          _
        // Predicated region
        $region21: #{tpu_custom_call.1} parent=11 // pred_check
          %p478 = pneg %p149
        $region22: #{tpu_custom_call.1} parent=11 // pred_check_branch
          %480 = sbr.rel (%p478) target = $region24
        $region23: #{tpu_custom_call.1} parent=11 // pred_region
          _
        $region24: #{tpu_custom_call.1} parent=11 // pred_fallthru
          _
        // Predicated region
        $region25: #{tpu_custom_call.1} parent=11 // pred_check
          %p481 = pneg %p170
        $region26: #{tpu_custom_call.1} parent=11 // pred_check_branch
          %483 = sbr.rel (%p481) target = $region28
        $region27: #{tpu_custom_call.1} parent=11 // pred_region
          _
        $region28: #{tpu_custom_call.1} parent=11 // pred_fallthru
          _
        // Predicated region
        $region29: #{tpu_custom_call.1} parent=11 // pred_check
          %p484 = pneg %p191
        $region30: #{tpu_custom_call.1} parent=11 // pred_check_branch
          %486 = sbr.rel (%p484) target = $region32
        $region31: #{tpu_custom_call.1} parent=11 // pred_region
          _
        $region32: #{tpu_custom_call.1} parent=11 // pred_fallthru
          _
        // Predicated region
        $region33: #{tpu_custom_call.1} parent=11 // pred_check
          %p487 = pneg %p212
        $region34: #{tpu_custom_call.1} parent=11 // pred_check_branch
          %489 = sbr.rel (%p487) target = $region36
        $region35: #{tpu_custom_call.1} parent=11 // pred_region
          _
        $region36: #{tpu_custom_call.1} parent=11 // pred_fallthru
          _
        // Predicated region
        $region37: #{tpu_custom_call.1} parent=11 // pred_check
          %p490 = pneg %p233
        $region38: #{tpu_custom_call.1} parent=11 // pred_check_branch
          %492 = sbr.rel (%p490) target = $region40
        $region39: #{tpu_custom_call.1} parent=11 // pred_region
          _
        $region40: #{tpu_custom_call.1} parent=11 // pred_fallthru
          _
        // Predicated region
        $region41: #{tpu_custom_call.1} parent=11 // pred_check
          %p493 = pneg %p254
        $region42: #{tpu_custom_call.1} parent=11 // pred_check_branch
          %495 = sbr.rel (%p493) target = $region44
        $region43: #{tpu_custom_call.1} parent=11 // pred_region
          _
        $region44: #{tpu_custom_call.1} parent=11 // pred_fallthru
          _
        // Predicated region
        $region45: #{tpu_custom_call.1} parent=11 // pred_check
          %p496 = pneg %p275
        $region46: #{tpu_custom_call.1} parent=11 // pred_check_branch
          %498 = sbr.rel (%p496) target = $region48
        $region47: #{tpu_custom_call.1} parent=11 // pred_region
          _
        $region48: #{tpu_custom_call.1} parent=11 // pred_fallthru
          _
        // Predicated region
        $region49: #{tpu_custom_call.1} parent=11 // pred_check
          %p499 = pneg %p296
        $region50: #{tpu_custom_call.1} parent=11 // pred_check_branch
          %501 = sbr.rel (%p499) target = $region52
        $region51: #{tpu_custom_call.1} parent=11 // pred_region
          _
        $region52: #{tpu_custom_call.1} parent=11 // pred_fallthru
          _
        // Predicated region
        $region53: #{tpu_custom_call.1} parent=11 // pred_check
          %p502 = pneg %p317
        $region54: #{tpu_custom_call.1} parent=11 // pred_check_branch
          %504 = sbr.rel (%p502) target = $region56
        $region55: #{tpu_custom_call.1} parent=11 // pred_region
          _
        $region56: #{tpu_custom_call.1} parent=11 // pred_fallthru
          _
        // Predicated region
        $region57: #{tpu_custom_call.1} parent=11 // pred_check
          %p505 = pneg %p338
        $region58: #{tpu_custom_call.1} parent=11 // pred_check_branch
          %507 = sbr.rel (%p505) target = $region60
        $region59: #{tpu_custom_call.1} parent=11 // pred_region
          _
        $region60: #{tpu_custom_call.1} parent=11 // pred_fallthru
          _
        // Predicated region
        $region61: #{tpu_custom_call.1} parent=11 // pred_check
          %p508 = pneg %p359
        $region62: #{tpu_custom_call.1} parent=11 // pred_check_branch
          %510 = sbr.rel (%p508) target = $region64
        $region63: #{tpu_custom_call.1} parent=11 // pred_region
          %512 = vsyncadd [#allocation10], 0
          %s513 = sshll.u32 %s14, 4
          %s514 = int_to_ptr.hbm [resolvable:$true] %s513
          %s515 = sshll.u32 [#allocation9], 4
          %s516 = int_to_ptr.vmem [resolvable:$true] %s515
          %521 = dma.hbm_to_vmem [thread:$0]  %s514, 512, %s516, [#allocation10], 128, 128, 8
        $region64: #{tpu_custom_call.1} parent=11 // pred_fallthru
          _
        // Predicated region
        $region65: #{tpu_custom_call.1} parent=11 // pred_check
          %p522 = pneg %p380
        $region66: #{tpu_custom_call.1} parent=11 // pred_check_branch
          %524 = sbr.rel (%p522) target = $region68
        $region67: #{tpu_custom_call.1} parent=11 // pred_region
          _
        $region68: #{tpu_custom_call.1} parent=11 // pred_fallthru
          _
        // Predicated region
        $region69: #{tpu_custom_call.1} parent=11 // pred_check
          %p525 = pneg %p401
        $region70: #{tpu_custom_call.1} parent=11 // pred_check_branch
          %527 = sbr.rel (%p525) target = $region72
        $region71: #{tpu_custom_call.1} parent=11 // pred_region
          _
        $region72: #{tpu_custom_call.1} parent=11 // pred_fallthru
          _
        // Predicated region
        $region73: #{tpu_custom_call.1} parent=11 // pred_check
          %p528 = pneg %p422
        $region74: #{tpu_custom_call.1} parent=11 // pred_check_branch
          %530 = sbr.rel (%p528) target = $region76
        $region75: #{tpu_custom_call.1} parent=11 // pred_region
          _
        $region76: #{tpu_custom_call.1} parent=11 // pred_fallthru
          _
      $region12: #{tpu_custom_call.1} parent=5 // pred_fallthru
        _
      %p531 = scmp.lt.s32.totalorder %s34, 2
      // Predicated region
      $region77: #{tpu_custom_call.1} parent=5 // pred_check
        %p532 = pneg %p531
      $region78: #{tpu_custom_call.1} parent=5 // pred_check_branch
        %534 = sbr.rel (%p532) target = $region80
      $region79: #{tpu_custom_call.1} parent=5 // pred_region
        // Predicated region
        $region81: #{tpu_custom_call.1} parent=79 // pred_check
          %p535 = pneg %p54
        $region82: #{tpu_custom_call.1} parent=79 // pred_check_branch
          %537 = sbr.rel (%p535) target = $region84
        $region83: #{tpu_custom_call.1} parent=79 // pred_region
          %s538 = sand.u32 %s44, 1
          %s539 = scalar_lea.sflag [#allocation4], %s538
          %s540 = sand.u32 %s44, 1
          %s541 = smul.addr %s540, 8
          %s542 = scalar_lea.vmem [#allocation3], %s541
          %544 = vsyncadd %s539, 0
          %s545 = smul.addr %s34, 8
          %s546 = scalar_lea.hbm %s0, %s545
          %s548 = sshll.u32 %s546, 4
          %s549 = int_to_ptr.hbm [resolvable:$true] %s548
          %s550 = sshll.u32 %s542, 4
          %s551 = int_to_ptr.vmem [resolvable:$true] %s550
          %553 = dma.hbm_to_vmem [thread:$0]  %s549, 128, %s551, %s539
        $region84: #{tpu_custom_call.1} parent=79 // pred_fallthru
          _
        // Predicated region
        $region85: #{tpu_custom_call.1} parent=79 // pred_check
          %p554 = pneg %p80
        $region86: #{tpu_custom_call.1} parent=79 // pred_check_branch
          %556 = sbr.rel (%p554) target = $region88
        $region87: #{tpu_custom_call.1} parent=79 // pred_region
          %s557 = sand.u32 %s34, 1
          %s558 = scalar_lea.sflag [#allocation7], %s557
          %s559 = sand.u32 %s70, 1
          %s560 = smul.addr %s559, 8
          %s561 = scalar_lea.vmem [#allocation6], %s560
          %563 = vsyncadd %s558, 0
          %s564 = smul.addr %s34, 8
          %s565 = scalar_lea.hbm %s1, %s564
          %s567 = sshll.u32 %s565, 4
          %s568 = int_to_ptr.hbm [resolvable:$true] %s567
          %s569 = sshll.u32 %s561, 4
          %s570 = int_to_ptr.vmem [resolvable:$true] %s569
          %572 = dma.hbm_to_vmem [thread:$0]  %s568, 128, %s570, %s558
        $region88: #{tpu_custom_call.1} parent=79 // pred_fallthru
          _
      $region80: #{tpu_custom_call.1} parent=5 // pred_fallthru
        _
      %p573 = scmp.le.s32.totalorder 1, %s34
      %p574 = scmp.lt.s32.totalorder %s34, 3
      %p575 = pnand %p573, %p574
      %p576 = pneg %p575
      // Predicated region
      $region89: #{tpu_custom_call.1} parent=5 // pred_check
        _
      $region90: #{tpu_custom_call.1} parent=5 // pred_check_branch
        %578 = sbr.rel (%p575) target = $region92
      $region91: #{tpu_custom_call.1} parent=5 // pred_region
        %s579 = ssub.s32 %s34, 1
        %s580 = sand.u32 %s47, 1
        %s581 = scalar_lea.sflag [#allocation4], %s580
        %s582 = sand.u32 %s47, 1
        %s583 = smul.addr %s582, 8
        %s584 = scalar_lea.vmem [#allocation3], %s583
        // Predicated region
        $region93: #{tpu_custom_call.1} parent=91 // pred_check
          %p585 = pneg %p60
        $region94: #{tpu_custom_call.1} parent=91 // pred_check_branch
          %587 = sbr.rel (%p585) target = $region96
        $region95: #{tpu_custom_call.1} parent=91 // pred_region
          %589 = dma.done %s581, 128
        $region96: #{tpu_custom_call.1} parent=91 // pred_fallthru
          _
        %s590 = sand.u32 %s39, 1
        %s591 = scalar_lea.sflag [#allocation7], %s590
        %s592 = sand.u32 %s73, 1
        %s593 = smul.addr %s592, 8
        %s594 = scalar_lea.vmem [#allocation6], %s593
        // Predicated region
        $region97: #{tpu_custom_call.1} parent=91 // pred_check
          %p595 = pneg %p86
        $region98: #{tpu_custom_call.1} parent=91 // pred_check_branch
          %597 = sbr.rel (%p595) target = $region100
        $region99: #{tpu_custom_call.1} parent=91 // pred_region
          %599 = dma.done %s591, 128
        $region100: #{tpu_custom_call.1} parent=91 // pred_fallthru
          _
        // Predicated region
        $region101: #{tpu_custom_call.1} parent=91 // pred_check
          %p600 = pneg %p128
        $region102: #{tpu_custom_call.1} parent=91 // pred_check_branch
          %602 = sbr.rel (%p600) target = $region104
        $region103: #{tpu_custom_call.1} parent=91 // pred_region
          %604 = dma.done [#allocation7], 16
        $region104: #{tpu_custom_call.1} parent=91 // pred_fallthru
          _
        // Predicated region
        $region105: #{tpu_custom_call.1} parent=91 // pred_check
          %p605 = pneg %p359
        $region106: #{tpu_custom_call.1} parent=91 // pred_check_branch
          %607 = sbr.rel (%p605) target = $region108
        $region107: #{tpu_custom_call.1} parent=91 // pred_region
          %609 = dma.done [#allocation10], 512
        $region108: #{tpu_custom_call.1} parent=91 // pred_fallthru
          _
        %s610 = sand.u32 %s47, 1
        %s611 = scalar_lea.sflag [#allocation4], %s610
        %s612 = sand.u32 %s47, 1
        %s613 = smul.addr %s612, 8
        %s614 = scalar_lea.vmem [#allocation3], %s613
        %p615 = pneg %p60
        %p616 = pneg %p57
        %s617 = sand.u32 %s39, 1
        %s618 = scalar_lea.sflag [#allocation7], %s617
        %s619 = sand.u32 %s73, 1
        %s620 = smul.addr %s619, 8
        %s621 = scalar_lea.vmem [#allocation6], %s620
        %p622 = pneg %p86
        %p623 = pneg %p83
        %p624 = pneg %p107
        %p625 = pneg %p104
        %p626 = pneg %p128
        %p627 = pneg %p125
        %p628 = pneg %p149
        %p629 = pneg %p146
        %p630 = pneg %p170
        %p631 = pneg %p167
        %p632 = pneg %p191
        %p633 = pneg %p188
        %p634 = pneg %p212
        %p635 = pneg %p209
        %p636 = pneg %p233
        %p637 = pneg %p230
        %p638 = pneg %p254
        %p639 = pneg %p251
        %p640 = pneg %p275
        %p641 = pneg %p272
        %p642 = pneg %p296
        %p643 = pneg %p293
        %p644 = pneg %p317
        %p645 = pneg %p314
        %p646 = pneg %p338
        %p647 = pneg %p335
        %p648 = pneg %p359
        %p649 = pneg %p356
        %p650 = pneg %p380
        %p651 = pneg %p377
        %p652 = pneg %p401
        %p653 = pneg %p398
        %p654 = pneg %p422
        %p655 = pneg %p419
        %p656 = pneg %p448
        %p657 = pneg %p445
        %s658 = sand.u32 %s435, 1
        %s659 = scalar_lea.sflag [#allocation5], %s658
        %s660 = sand.u32 %s435, 1
        %s661 = smul.addr %s660, 8
        %s662 = scalar_lea.vmem [#allocation11], %s661
        %v663 = vld [vmem:[%s584] sm:$0xff]
        %v664 = vld [vmem:[%s594] sm:$0xff]
        %vm665 = vcmask 261120
        %v666 = vsel %vm665, %v663, 0.0
        %667 = vadd.xlane.f32.xlu0 %v666
        %v668 = vpop.xlane.xlu0 %667
        %v669 = vrcp.pop 32.0
        %v670 = vmul.f32 32.0, %v669
        %v671 = vsub.f32 1.0, %v670
        %v672 = vmul.f32 %v669, %v671
        %v673 = vadd.f32 %v669, %v672
        %vm674 = vweird.f32 %v669
        %v675 = vsel %vm674, %v669, %v673
        %v676 = vmul.f32 %v668, %v675
        %v677 = vsub.f32 %v663, %v676
        %v678 = vmul.f32 %v677, %v677
        %v679 = vsel %vm665, %v678, 0.0
        %680 = vadd.xlane.f32.xlu0 %v679
        %v681 = vpop.xlane.xlu0 %680
        %v682 = vmul.f32 %v681, %v675
        %v683 = vadd.f32 %v682, 1e-06
        %v684 = vrsqrt.pop %v683
        %v685 = vmul.f32 %v684, %v683
        %v686 = vmul.f32 %v685, %v684
        %v687 = vmul.f32 0.5, %v686
        %v688 = vsub.f32 1.5, %v687
        %v689 = vmul.f32 %v684, %v688
        %vm690 = vweird.f32 %v683
        %vm691 = vweird.f32 %v684
        %vm692 = vmor %vm690, %vm691
        %v693 = vsel %vm692, %v684, %v689
        %v694 = vmul.f32 %v677, %v693
        %v695 = vld [vmem:[%s2] sm:$0x1]
        %v697 = vperm.slane %v695, 0
        %v699 = vmul.f32 %v694, %v697
        %v700 = vld [vmem:[#allocation8] sm:$0x1]
        %v702 = vperm.slane %v700, 0
        %v704 = vadd.f32 %v699, %v702
        %v705 = vsel %vm665, %v664, 0.0
        %706 = vadd.xlane.f32.xlu0 %v705
        %v707 = vpop.xlane.xlu0 %706
        %v708 = vmul.f32 %v707, %v675
        %v709 = vsub.f32 %v664, %v708
        %v710 = vmul.f32 %v709, %v709
        %v711 = vsel %vm665, %v710, 0.0
        %712 = vadd.xlane.f32.xlu0 %v711
        %v713 = vpop.xlane.xlu0 %712
        %v714 = vmul.f32 %v713, %v675
        %v715 = vadd.f32 %v714, 1e-06
        %v716 = vrsqrt.pop %v715
        %v717 = vmul.f32 %v716, %v715
        %v718 = vmul.f32 %v717, %v716
        %v719 = vmul.f32 0.5, %v718
        %v720 = vsub.f32 1.5, %v719
        %v721 = vmul.f32 %v716, %v720
        %vm722 = vweird.f32 %v715
        %vm723 = vweird.f32 %v716
        %vm724 = vmor %vm722, %vm723
        %v725 = vsel %vm724, %v716, %v721
        %v726 = vmul.f32 %v709, %v725
        %v727 = vld [vmem:[%s4] sm:$0x1]
        %v729 = vperm.slane %v727, 0
        %v731 = vmul.f32 %v726, %v729
        %v732 = vld [vmem:[%s5] sm:$0x1]
        %v734 = vperm.slane %v732, 0
        %v736 = vadd.f32 %v731, %v734
        %v737 = vld [vmem:[%s6] sm:$0xff]
        %v738 = vld [vmem:[%s6 + $0x8] sm:$0xff]
        %v739 = vld [vmem:[%s6 + $0x10] sm:$0xff]
        %v740 = vld [vmem:[%s6 + $0x18] sm:$0xff]
        %v741 = vld [vmem:[%s7] sm:$0x1]
        %v743 = vperm.slane %v741, 0
        %v746 = vsel %vm665, %v736, 0
        %748 = vmatpush.msra.mxu0 0.0
        %749 = vmatpush.msra.mxu0 0.0
        %750 = vmatpush.msra.mxu0 0.0
        %751 = vmatpush.msra.mxu0 0.0
        %752 = vmatpush.msra.mxu0 0.0
        %753 = vmatpush.msra.mxu0 0.0
        %754 = vmatpush.msra.mxu0 0.0
        %755 = vmatpush.msra.mxu0 0.0
        %756 = vmatpush.msra.mxu0 0.0
        %757 = vmatpush.msra.mxu0 0.0
        %758 = vmatpush.msra.mxu0 0.0
        %759 = vmatpush.msra.mxu0 0.0
        %760 = vmatpush.msra.mxu0 %v740
        %761 = vmatpush.msra.mxu0 %v739
        %762 = vmatpush.msra.mxu0 %v738
        %763 = vmatpush.msra.mxu0 %v737
        %764 = vmatmul.f32.gmra.mxu0 %v746
        %v765 = vpop.f32.mrf.mxu0
        %v766 = vadd.f32 %v743, %v765
        %767 = vdwg.mxu0
        %v768 = vld [vmem:[%s8] sm:$0xff]
        %v769 = vld [vmem:[%s8 + $0x8] sm:$0xff]
        %v770 = vld [vmem:[%s8 + $0x10] sm:$0xff]
        %v771 = vld [vmem:[%s8 + $0x18] sm:$0xff]
        %v772 = vld [vmem:[%s9] sm:$0x1]
        %v774 = vperm.slane %v772, 0
        %v777 = vsel %vm665, %v704, 0
        %779 = vmatpush.msra.mxu0 0.0
        %780 = vmatpush.msra.mxu0 0.0
        %781 = vmatpush.msra.mxu0 0.0
        %782 = vmatpush.msra.mxu0 0.0
        %783 = vmatpush.msra.mxu0 0.0
        %784 = vmatpush.msra.mxu0 0.0
        %785 = vmatpush.msra.mxu0 0.0
        %786 = vmatpush.msra.mxu0 0.0
        %787 = vmatpush.msra.mxu0 0.0
        %788 = vmatpush.msra.mxu0 0.0
        %789 = vmatpush.msra.mxu0 0.0
        %790 = vmatpush.msra.mxu0 0.0
        %791 = vmatpush.msra.mxu0 %v771
        %792 = vmatpush.msra.mxu0 %v770
        %793 = vmatpush.msra.mxu0 %v769
        %794 = vmatpush.msra.mxu0 %v768
        %795 = vmatmul.f32.gmra.mxu0 %v777
        %v796 = vpop.f32.mrf.mxu0
        %v797 = vadd.f32 %v774, %v796
        %798 = vdwg.mxu0
        %vm799 = vcmask 64512
        %v801 = vsel %vm799, %v766, 0
        %v804 = vsel %vm799, %v797, 0
        %806 = vmatpush.xpose.msra.mxu0 0.0
        %807 = vmatpush.xpose.msra.mxu0 0.0
        %808 = vmatpush.xpose.msra.mxu0 0.0
        %809 = vmatpush.xpose.msra.mxu0 0.0
        %810 = vmatpush.xpose.msra.mxu0 0.0
        %811 = vmatpush.xpose.msra.mxu0 0.0
        %812 = vmatpush.xpose.msra.mxu0 0.0
        %813 = vmatpush.xpose.msra.mxu0 0.0
        %814 = vmatpush.xpose.msra.mxu0 0.0
        %815 = vmatpush.xpose.msra.mxu0 0.0
        %816 = vmatpush.xpose.msra.mxu0 0.0
        %817 = vmatpush.xpose.msra.mxu0 0.0
        %818 = vmatpush.xpose.msra.mxu0 0.0
        %819 = vmatpush.xpose.msra.mxu0 0.0
        %820 = vmatpush.xpose.msra.mxu0 0.0
        %821 = vmatpush.xpose.msra.mxu0 %v804
        %822 = vmatmul.f32.gmra.mxu0 %v801
        %v823 = vpop.f32.mrf.mxu0
        %v824 = vadd.f32 0.0, %v823
        %825 = vdwg.mxu0
        %v826 = vsel %vm799, %v824, -inf
        %827 = vmax.xlane.f32.xlu0 %v826
        %v828 = vpop.xlane.xlu0 %827
        %v829 = vsub.f32 %v824, %v828
        %v830 = vmul.f32 %v829, 1.442695
        %v831 = vpow.pop %v830
        %v832 = vsel %vm799, %v831, 0.0
        %833 = vadd.xlane.f32.xlu0 %v832
        %v834 = vpop.xlane.xlu0 %833
        %v835 = vrcp.pop %v834
        %v836 = vmul.f32 %v834, %v835
        %v837 = vsub.f32 1.0, %v836
        %v838 = vmul.f32 %v835, %v837
        %v839 = vadd.f32 %v835, %v838
        %vm840 = vweird.f32 %v834
        %vm841 = vweird.f32 %v835
        %vm842 = vmor %vm840, %vm841
        %v843 = vsel %vm842, %v835, %v839
        %v844 = vand.u32 2147483647, %v834
        %vm845 = vcmp.eq.f32.partialorder %v844, 8.507059e+37
        %v846 = vand.u32 %v834, 2147483648
        %v847 = vor.u32 1.1754944e-38, %v846
        %v848 = vsel %vm845, %v847, %v843
        %v849 = vmul.f32 %v831, %v848
        %850 = vrot.lane.b32.xlu0 %v797, 96
        %v851 = vpop.permute.xlu0 %850
        %v854 = vsel %vm799, %v849, 0
        %856 = vmatpush.msra.mxu0 0.0
        %857 = vmatpush.msra.mxu0 0.0
        %858 = vmatpush.msra.mxu0 0.0
        %859 = vmatpush.msra.mxu0 0.0
        %860 = vmatpush.msra.mxu0 0.0
        %861 = vmatpush.msra.mxu0 0.0
        %862 = vmatpush.msra.mxu0 0.0
        %863 = vmatpush.msra.mxu0 0.0
        %864 = vmatpush.msra.mxu0 0.0
        %865 = vmatpush.msra.mxu0 0.0
        %866 = vmatpush.msra.mxu0 0.0
        %867 = vmatpush.msra.mxu0 0.0
        %868 = vmatpush.msra.mxu0 0.0
        %869 = vmatpush.msra.mxu0 0.0
        %870 = vmatpush.msra.mxu0 0.0
        %871 = vmatpush.msra.mxu0 %v851
        %872 = vmatmul.f32.gmra.mxu0 %v854
        %v873 = vpop.f32.mrf.mxu0
        %v874 = vadd.f32 0.0, %v873
        %875 = vdwg.mxu0
        %876 = vst.msk [vmem:[#allocation2] sm:$0xff] %vm799, %v874
        %877 = vrot.lane.b32.xlu0 %v766, 120
        %v878 = vpop.permute.xlu0 %877
        %879 = vrot.lane.b32.xlu0 %v797, 120
        %v880 = vpop.permute.xlu0 %879
        %v881 = vsel %vm799, %v878, 0
        %v883 = vsel %vm799, %v880, 0
        %885 = vmatpush.xpose.msra.mxu0 0.0
        %886 = vmatpush.xpose.msra.mxu0 0.0
        %887 = vmatpush.xpose.msra.mxu0 0.0
        %888 = vmatpush.xpose.msra.mxu0 0.0
        %889 = vmatpush.xpose.msra.mxu0 0.0
        %890 = vmatpush.xpose.msra.mxu0 0.0
        %891 = vmatpush.xpose.msra.mxu0 0.0
        %892 = vmatpush.xpose.msra.mxu0 0.0
        %893 = vmatpush.xpose.msra.mxu0 0.0
        %894 = vmatpush.xpose.msra.mxu0 0.0
        %895 = vmatpush.xpose.msra.mxu0 0.0
        %896 = vmatpush.xpose.msra.mxu0 0.0
        %897 = vmatpush.xpose.msra.mxu0 0.0
        %898 = vmatpush.xpose.msra.mxu0 0.0
        %899 = vmatpush.xpose.msra.mxu0 0.0
        %900 = vmatpush.xpose.msra.mxu0 %v883
        %901 = vmatmul.f32.gmra.mxu0 %v881
        %v902 = vpop.f32.mrf.mxu0
        %v903 = vadd.f32 0.0, %v902
        %904 = vdwg.mxu0
        %v905 = vsel %vm799, %v903, -inf
        %906 = vmax.xlane.f32.xlu0 %v905
        %v907 = vpop.xlane.xlu0 %906
        %v908 = vsub.f32 %v903, %v907
        %v909 = vmul.f32 %v908, 1.442695
        %v910 = vpow.pop %v909
        %v911 = vsel %vm799, %v910, 0.0
        %912 = vadd.xlane.f32.xlu0 %v911
        %v913 = vpop.xlane.xlu0 %912
        %v914 = vrcp.pop %v913
        %v915 = vmul.f32 %v913, %v914
        %v916 = vsub.f32 1.0, %v915
        %v917 = vmul.f32 %v914, %v916
        %v918 = vadd.f32 %v914, %v917
        %vm919 = vweird.f32 %v913
        %vm920 = vweird.f32 %v914
        %vm921 = vmor %vm919, %vm920
        %v922 = vsel %vm921, %v914, %v918
        %v923 = vand.u32 2147483647, %v913
        %vm924 = vcmp.eq.f32.partialorder %v923, 8.507059e+37
        %v925 = vand.u32 %v913, 2147483648
        %v926 = vor.u32 1.1754944e-38, %v925
        %v927 = vsel %vm924, %v926, %v922
        %v928 = vmul.f32 %v910, %v927
        %929 = vrot.lane.b32.xlu0 %v797, 88
        %v930 = vpop.permute.xlu0 %929
        %v933 = vsel %vm799, %v928, 0
        %935 = vmatpush.msra.mxu0 0.0
        %936 = vmatpush.msra.mxu0 0.0
        %937 = vmatpush.msra.mxu0 0.0
        %938 = vmatpush.msra.mxu0 0.0
        %939 = vmatpush.msra.mxu0 0.0
        %940 = vmatpush.msra.mxu0 0.0
        %941 = vmatpush.msra.mxu0 0.0
        %942 = vmatpush.msra.mxu0 0.0
        %943 = vmatpush.msra.mxu0 0.0
        %944 = vmatpush.msra.mxu0 0.0
        %945 = vmatpush.msra.mxu0 0.0
        %946 = vmatpush.msra.mxu0 0.0
        %947 = vmatpush.msra.mxu0 0.0
        %948 = vmatpush.msra.mxu0 0.0
        %949 = vmatpush.msra.mxu0 0.0
        %950 = vmatpush.msra.mxu0 %v930
        %951 = vmatmul.f32.gmra.mxu0 %v933
        %v952 = vpop.f32.mrf.mxu0
        %v953 = vadd.f32 0.0, %v952
        %954 = vdwg.mxu0
        %956 = vrot.lane.b32.xlu0 %v953, 8
        %v957 = vpop.permute.xlu0 %956
        %vm959 = vcmask 130112
        %960 = vst.msk [vmem:[#allocation2] sm:$0xff] %vm959, %v957
        %961 = vrot.lane.b32.xlu0 %v766, 112
        %v962 = vpop.permute.xlu0 %961
        %963 = vrot.lane.b32.xlu0 %v797, 112
        %v964 = vpop.permute.xlu0 %963
        %v965 = vsel %vm799, %v962, 0
        %v967 = vsel %vm799, %v964, 0
        %969 = vmatpush.xpose.msra.mxu0 0.0
        %970 = vmatpush.xpose.msra.mxu0 0.0
        %971 = vmatpush.xpose.msra.mxu0 0.0
        %972 = vmatpush.xpose.msra.mxu0 0.0
        %973 = vmatpush.xpose.msra.mxu0 0.0
        %974 = vmatpush.xpose.msra.mxu0 0.0
        %975 = vmatpush.xpose.msra.mxu0 0.0
        %976 = vmatpush.xpose.msra.mxu0 0.0
        %977 = vmatpush.xpose.msra.mxu0 0.0
        %978 = vmatpush.xpose.msra.mxu0 0.0
        %979 = vmatpush.xpose.msra.mxu0 0.0
        %980 = vmatpush.xpose.msra.mxu0 0.0
        %981 = vmatpush.xpose.msra.mxu0 0.0
        %982 = vmatpush.xpose.msra.mxu0 0.0
        %983 = vmatpush.xpose.msra.mxu0 0.0
        %984 = vmatpush.xpose.msra.mxu0 %v967
        %985 = vmatmul.f32.gmra.mxu0 %v965
        %v986 = vpop.f32.mrf.mxu0
        %v987 = vadd.f32 0.0, %v986
        %988 = vdwg.mxu0
        %v989 = vsel %vm799, %v987, -inf
        %990 = vmax.xlane.f32.xlu0 %v989
        %v991 = vpop.xlane.xlu0 %990
        %v992 = vsub.f32 %v987, %v991
        %v993 = vmul.f32 %v992, 1.442695
        %v994 = vpow.pop %v993
        %v995 = vsel %vm799, %v994, 0.0
        %996 = vadd.xlane.f32.xlu0 %v995
        %v997 = vpop.xlane.xlu0 %996
        %v998 = vrcp.pop %v997
        %v999 = vmul.f32 %v997, %v998
        %v1000 = vsub.f32 1.0, %v999
        %v1001 = vmul.f32 %v998, %v1000
        %v1002 = vadd.f32 %v998, %v1001
        %vm1003 = vweird.f32 %v997
        %vm1004 = vweird.f32 %v998
        %vm1005 = vmor %vm1003, %vm1004
        %v1006 = vsel %vm1005, %v998, %v1002
        %v1007 = vand.u32 2147483647, %v997
        %vm1008 = vcmp.eq.f32.partialorder %v1007, 8.507059e+37
        %v1009 = vand.u32 %v997, 2147483648
        %v1010 = vor.u32 1.1754944e-38, %v1009
        %v1011 = vsel %vm1008, %v1010, %v1006
        %v1012 = vmul.f32 %v994, %v1011
        %1013 = vrot.lane.b32.xlu0 %v797, 80
        %v1014 = vpop.permute.xlu0 %1013
        %v1017 = vsel %vm799, %v1012, 0
        %1019 = vmatpush.msra.mxu0 0.0
        %1020 = vmatpush.msra.mxu0 0.0
        %1021 = vmatpush.msra.mxu0 0.0
        %1022 = vmatpush.msra.mxu0 0.0
        %1023 = vmatpush.msra.mxu0 0.0
        %1024 = vmatpush.msra.mxu0 0.0
        %1025 = vmatpush.msra.mxu0 0.0
        %1026 = vmatpush.msra.mxu0 0.0
        %1027 = vmatpush.msra.mxu0 0.0
        %1028 = vmatpush.msra.mxu0 0.0
        %1029 = vmatpush.msra.mxu0 0.0
        %1030 = vmatpush.msra.mxu0 0.0
        %1031 = vmatpush.msra.mxu0 0.0
        %1032 = vmatpush.msra.mxu0 0.0
        %1033 = vmatpush.msra.mxu0 0.0
        %1034 = vmatpush.msra.mxu0 %v1014
        %1035 = vmatmul.f32.gmra.mxu0 %v1017
        %v1036 = vpop.f32.mrf.mxu0
        %v1037 = vadd.f32 0.0, %v1036
        %1038 = vdwg.mxu0
        %1040 = vrot.lane.b32.xlu0 %v1037, 16
        %v1041 = vpop.permute.xlu0 %1040
        %vm1043 = vcmask 195712
        %1044 = vst.msk [vmem:[#allocation2] sm:$0xff] %vm1043, %v1041
        %1045 = vrot.lane.b32.xlu0 %v766, 104
        %v1046 = vpop.permute.xlu0 %1045
        %1047 = vrot.lane.b32.xlu0 %v797, 104
        %v1048 = vpop.permute.xlu0 %1047
        %v1049 = vsel %vm799, %v1046, 0
        %v1051 = vsel %vm799, %v1048, 0
        %1053 = vmatpush.xpose.msra.mxu0 0.0
        %1054 = vmatpush.xpose.msra.mxu0 0.0
        %1055 = vmatpush.xpose.msra.mxu0 0.0
        %1056 = vmatpush.xpose.msra.mxu0 0.0
        %1057 = vmatpush.xpose.msra.mxu0 0.0
        %1058 = vmatpush.xpose.msra.mxu0 0.0
        %1059 = vmatpush.xpose.msra.mxu0 0.0
        %1060 = vmatpush.xpose.msra.mxu0 0.0
        %1061 = vmatpush.xpose.msra.mxu0 0.0
        %1062 = vmatpush.xpose.msra.mxu0 0.0
        %1063 = vmatpush.xpose.msra.mxu0 0.0
        %1064 = vmatpush.xpose.msra.mxu0 0.0
        %1065 = vmatpush.xpose.msra.mxu0 0.0
        %1066 = vmatpush.xpose.msra.mxu0 0.0
        %1067 = vmatpush.xpose.msra.mxu0 0.0
        %1068 = vmatpush.xpose.msra.mxu0 %v1051
        %1069 = vmatmul.f32.gmra.mxu0 %v1049
        %v1070 = vpop.f32.mrf.mxu0
        %v1071 = vadd.f32 0.0, %v1070
        %1072 = vdwg.mxu0
        %v1073 = vsel %vm799, %v1071, -inf
        %1074 = vmax.xlane.f32.xlu0 %v1073
        %v1075 = vpop.xlane.xlu0 %1074
        %v1076 = vsub.f32 %v1071, %v1075
        %v1077 = vmul.f32 %v1076, 1.442695
        %v1078 = vpow.pop %v1077
        %v1079 = vsel %vm799, %v1078, 0.0
        %1080 = vadd.xlane.f32.xlu0 %v1079
        %v1081 = vpop.xlane.xlu0 %1080
        %v1082 = vrcp.pop %v1081
        %v1083 = vmul.f32 %v1081, %v1082
        %v1084 = vsub.f32 1.0, %v1083
        %v1085 = vmul.f32 %v1082, %v1084
        %v1086 = vadd.f32 %v1082, %v1085
        %vm1087 = vweird.f32 %v1081
        %vm1088 = vweird.f32 %v1082
        %vm1089 = vmor %vm1087, %vm1088
        %v1090 = vsel %vm1089, %v1082, %v1086
        %v1091 = vand.u32 2147483647, %v1081
        %vm1092 = vcmp.eq.f32.partialorder %v1091, 8.507059e+37
        %v1093 = vand.u32 %v1081, 2147483648
        %v1094 = vor.u32 1.1754944e-38, %v1093
        %v1095 = vsel %vm1092, %v1094, %v1090
        %v1096 = vmul.f32 %v1078, %v1095
        %1097 = vrot.lane.b32.xlu0 %v797, 72
        %v1098 = vpop.permute.xlu0 %1097
        %v1101 = vsel %vm799, %v1096, 0
        %1103 = vmatpush.msra.mxu0 0.0
        %1104 = vmatpush.msra.mxu0 0.0
        %1105 = vmatpush.msra.mxu0 0.0
        %1106 = vmatpush.msra.mxu0 0.0
        %1107 = vmatpush.msra.mxu0 0.0
        %1108 = vmatpush.msra.mxu0 0.0
        %1109 = vmatpush.msra.mxu0 0.0
        %1110 = vmatpush.msra.mxu0 0.0
        %1111 = vmatpush.msra.mxu0 0.0
        %1112 = vmatpush.msra.mxu0 0.0
        %1113 = vmatpush.msra.mxu0 0.0
        %1114 = vmatpush.msra.mxu0 0.0
        %1115 = vmatpush.msra.mxu0 0.0
        %1116 = vmatpush.msra.mxu0 0.0
        %1117 = vmatpush.msra.mxu0 0.0
        %1118 = vmatpush.msra.mxu0 %v1098
        %1119 = vmatmul.f32.gmra.mxu0 %v1101
        %v1120 = vpop.f32.mrf.mxu0
        %v1121 = vadd.f32 0.0, %v1120
        %1122 = vdwg.mxu0
        %1124 = vrot.lane.b32.xlu0 %v1121, 24
        %v1125 = vpop.permute.xlu0 %1124
        %vm1127 = vcmask 261312
        %1128 = vst.msk [vmem:[#allocation2] sm:$0xff] %vm1127, %v1125
        %v1129 = vld [vmem:[#allocation2] sm:$0xff]
        %v1130 = vld [vmem:[%s10] sm:$0xff]
        %v1131 = vld [vmem:[%s10 + $0x8] sm:$0xff]
        %v1132 = vld [vmem:[%s10 + $0x10] sm:$0xff]
        %v1133 = vld [vmem:[%s10 + $0x18] sm:$0xff]
        %v1134 = vld [vmem:[%s11] sm:$0x1]
        %v1136 = vperm.slane %v1134, 0
        %v1139 = vsel %vm665, %v1129, 0
        %1141 = vmatpush.msra.mxu0 0.0
        %1142 = vmatpush.msra.mxu0 0.0
        %1143 = vmatpush.msra.mxu0 0.0
        %1144 = vmatpush.msra.mxu0 0.0
        %1145 = vmatpush.msra.mxu0 0.0
        %1146 = vmatpush.msra.mxu0 0.0
        %1147 = vmatpush.msra.mxu0 0.0
        %1148 = vmatpush.msra.mxu0 0.0
        %1149 = vmatpush.msra.mxu0 0.0
        %1150 = vmatpush.msra.mxu0 0.0
        %1151 = vmatpush.msra.mxu0 0.0
        %1152 = vmatpush.msra.mxu0 0.0
        %1153 = vmatpush.msra.mxu0 %v1133
        %1154 = vmatpush.msra.mxu0 %v1132
        %1155 = vmatpush.msra.mxu0 %v1131
        %1156 = vmatpush.msra.mxu0 %v1130
        %1157 = vmatmul.f32.gmra.mxu0 %v1139
        %v1158 = vpop.f32.mrf.mxu0
        %v1159 = vadd.f32 %v1136, %v1158
        %1160 = vdwg.mxu0
        %v1161 = vadd.f32 %v1159, %v663
        %v1162 = vsel %vm665, %v1161, 0.0
        %1163 = vadd.xlane.f32.xlu0 %v1162
        %v1164 = vpop.xlane.xlu0 %1163
        %v1165 = vmul.f32 %v1164, %v675
        %v1166 = vsub.f32 %v1161, %v1165
        %v1167 = vmul.f32 %v1166, %v1166
        %v1168 = vsel %vm665, %v1167, 0.0
        %1169 = vadd.xlane.f32.xlu0 %v1168
        %v1170 = vpop.xlane.xlu0 %1169
        %v1171 = vmul.f32 %v1170, %v675
        %v1172 = vadd.f32 %v1171, 1e-06
        %v1173 = vrsqrt.pop %v1172
        %v1174 = vmul.f32 %v1173, %v1172
        %v1175 = vmul.f32 %v1174, %v1173
        %v1176 = vmul.f32 0.5, %v1175
        %v1177 = vsub.f32 1.5, %v1176
        %v1178 = vmul.f32 %v1173, %v1177
        %vm1179 = vweird.f32 %v1172
        %vm1180 = vweird.f32 %v1173
        %vm1181 = vmor %vm1179, %vm1180
        %v1182 = vsel %vm1181, %v1173, %v1178
        %v1183 = vmul.f32 %v1166, %v1182
        %v1184 = vld [vmem:[%s12] sm:$0x1]
        %v1186 = vperm.slane %v1184, 0
        %v1188 = vmul.f32 %v1183, %v1186
        %v1189 = vld [vmem:[%s13] sm:$0x1]
        %v1191 = vperm.slane %v1189, 0
        %v1193 = vadd.f32 %v1188, %v1191
        %v1194 = vld [vmem:[#allocation9] sm:$0xff]
        %v1195 = vld [vmem:[#allocation9 + $0x8] sm:$0xff]
        %v1196 = vld [vmem:[#allocation9 + $0x10] sm:$0xff]
        %v1197 = vld [vmem:[#allocation9 + $0x18] sm:$0xff]
        %v1198 = vld [vmem:[%s15] sm:$0x1]
        %v1200 = vperm.slane %v1198, 0
        %v1203 = vsel %vm665, %v1193, 0
        %1205 = vmatpush.msra.mxu0 0.0
        %1206 = vmatpush.msra.mxu0 0.0
        %1207 = vmatpush.msra.mxu0 0.0
        %1208 = vmatpush.msra.mxu0 0.0
        %1209 = vmatpush.msra.mxu0 0.0
        %1210 = vmatpush.msra.mxu0 0.0
        %1211 = vmatpush.msra.mxu0 0.0
        %1212 = vmatpush.msra.mxu0 0.0
        %1213 = vmatpush.msra.mxu0 0.0
        %1214 = vmatpush.msra.mxu0 0.0
        %1215 = vmatpush.msra.mxu0 0.0
        %1216 = vmatpush.msra.mxu0 0.0
        %1217 = vmatpush.msra.mxu0 %v1197
        %1218 = vmatpush.msra.mxu0 %v1196
        %1219 = vmatpush.msra.mxu0 %v1195
        %1220 = vmatpush.msra.mxu0 %v1194
        %1221 = vmatmul.f32.gmra.mxu0 %v1203
        %v1222 = vpop.f32.mrf.mxu0
        %v1223 = vadd.f32 %v1200, %v1222
        %1224 = vdwg.mxu0
        %v1225 = vmul.f32 %v1223, 0.5
        %v1226 = vmul.f32 %v1223, 0.70710677
        %v1227 = vmul.f32 %v1226, %v1226
        %v1228 = vmin.f32 16.0, %v1227
        %v1229 = vmul.f32 %v1228, 2.1237322e-06
        %v1230 = vadd.f32 %v1229, 0.00028619796
        %v1231 = vmul.f32 %v1228, %v1230
        %v1232 = vadd.f32 %v1231, 0.0036580483
        %v1233 = vmul.f32 %v1228, %v1232
        %v1234 = vadd.f32 %v1233, 0.05243302
        %v1235 = vmul.f32 %v1228, %v1234
        %v1236 = vadd.f32 %v1235, 0.18741608
        %v1237 = vmul.f32 %v1228, %v1236
        %v1238 = vadd.f32 %v1237, 1.1283791
        %v1239 = vmul.f32 %v1226, %v1238
        %v1240 = vmul.f32 %v1228, 3.8918573e-05
        %v1241 = vadd.f32 %v1240, 0.001143296
        %v1242 = vmul.f32 %v1228, %v1241
        %v1243 = vadd.f32 %v1242, 0.014752088
        %v1244 = vmul.f32 %v1228, %v1243
        %v1245 = vadd.f32 %v1244, 0.112945676
        %v1246 = vmul.f32 %v1228, %v1245
        %v1247 = vadd.f32 %v1246, 0.4994258
        %v1248 = vmul.f32 %v1228, %v1247
        %v1249 = vadd.f32 %v1248, 1.0
        %v1250 = vrcp.pop %v1249
        %v1251 = vmul.f32 %v1249, %v1250
        %v1252 = vsub.f32 1.0, %v1251
        %v1253 = vmul.f32 %v1250, %v1252
        %v1254 = vadd.f32 %v1250, %v1253
        %vm1255 = vweird.f32 %v1249
        %vm1256 = vweird.f32 %v1250
        %vm1257 = vmor %vm1255, %vm1256
        %v1258 = vsel %vm1257, %v1250, %v1254
        %v1259 = vand.u32 2147483647, %v1249
        %vm1260 = vcmp.eq.f32.partialorder %v1259, 8.507059e+37
        %v1261 = vand.u32 %v1249, 2147483648
        %v1262 = vor.u32 1.1754944e-38, %v1261
        %v1263 = vsel %vm1260, %v1262, %v1258
        %v1264 = vmul.f32 %v1239, %v1263
        %v1265 = vmin.f32 %v1264, 1.0
        %v1266 = vmax.f32 %v1265, -1.0
        %v1267 = vadd.f32 %v1266, 1.0
        %v1268 = vmul.f32 %v1225, %v1267
        %v1269 = vld [vmem:[%s16] sm:$0xff]
        %v1270 = vld [vmem:[%s16 + $0x8] sm:$0xff]
        %v1271 = vld [vmem:[%s16 + $0x10] sm:$0xff]
        %v1272 = vld [vmem:[%s16 + $0x18] sm:$0xff]
        %v1273 = vld [vmem:[%s16 + $0x20] sm:$0xff]
        %v1274 = vld [vmem:[%s16 + $0x28] sm:$0xff]
        %v1275 = vld [vmem:[%s16 + $0x30] sm:$0xff]
        %v1276 = vld [vmem:[%s16 + $0x38] sm:$0xff]
        %v1277 = vld [vmem:[%s17] sm:$0x1]
        %v1279 = vperm.slane %v1277, 0
        %vm1281 = vcmask 523264
        %v1283 = vsel %vm1281, %v1268, 0
        %1285 = vmatpush.msra.mxu0 0.0
        %1286 = vmatpush.msra.mxu0 0.0
        %1287 = vmatpush.msra.mxu0 0.0
        %1288 = vmatpush.msra.mxu0 0.0
        %1289 = vmatpush.msra.mxu0 0.0
        %1290 = vmatpush.msra.mxu0 0.0
        %1291 = vmatpush.msra.mxu0 0.0
        %1292 = vmatpush.msra.mxu0 0.0
        %1293 = vmatpush.msra.mxu0 %v1276
        %1294 = vmatpush.msra.mxu0 %v1275
        %1295 = vmatpush.msra.mxu0 %v1274
        %1296 = vmatpush.msra.mxu0 %v1273
        %1297 = vmatpush.msra.mxu0 %v1272
        %1298 = vmatpush.msra.mxu0 %v1271
        %1299 = vmatpush.msra.mxu0 %v1270
        %1300 = vmatpush.msra.mxu0 %v1269
        %1301 = vmatmul.f32.gmra.mxu0 %v1283
        %v1302 = vpop.f32.mrf.mxu0
        %v1303 = vadd.f32 %v1279, %v1302
        %1304 = vdwg.mxu0
        %v1305 = vadd.f32 %v1161, %v1303
        %1306 = vst.msk [vmem:[%s662] sm:$0xff] %vm665, %v1305
        %s1307 = sand.u32 %s435, 1
        %s1308 = scalar_lea.sflag [#allocation5], %s1307
        %s1309 = sand.u32 %s435, 1
        %s1310 = smul.addr %s1309, 8
        %s1311 = scalar_lea.vmem [#allocation11], %s1310
        // Predicated region
        $region109: #{tpu_custom_call.1} parent=91 // pred_check
          %p1312 = pneg %p445
        $region110: #{tpu_custom_call.1} parent=91 // pred_check_branch
          %1314 = sbr.rel (%p1312) target = $region112
        $region111: #{tpu_custom_call.1} parent=91 // pred_region
          %1316 = vsyncadd %s1308, 0
          %s1317 = smul.addr %s39, 8
          %s1318 = scalar_lea.hbm %s18, %s1317
          %s1320 = sshll.u32 %s1311, 4
          %s1321 = int_to_ptr.vmem [resolvable:$true] %s1320
          %s1322 = sshll.u32 %s1318, 4
          %s1323 = int_to_ptr.hbm [resolvable:$true] %s1322
          %1325 = dma.vmem_to_hbm [thread:$0]  %s1321, 128, %s1323, %s1308
        $region112: #{tpu_custom_call.1} parent=91 // pred_fallthru
          _
      $region92: #{tpu_custom_call.1} parent=5 // pred_fallthru
        _
      %p1326 = scmp.le.s32.totalorder 2, %s34
      // Predicated region
      $region113: #{tpu_custom_call.1} parent=5 // pred_check
        %p1327 = pneg %p1326
      $region114: #{tpu_custom_call.1} parent=5 // pred_check_branch
        %1329 = sbr.rel (%p1327) target = $region116
      $region115: #{tpu_custom_call.1} parent=5 // pred_region
        %s1330 = ssub.s32 %s34, 2
        // Predicated region
        $region117: #{tpu_custom_call.1} parent=115 // pred_check
          %p1331 = pneg %p451
        $region118: #{tpu_custom_call.1} parent=115 // pred_check_branch
          %1333 = sbr.rel (%p1331) target = $region120
        $region119: #{tpu_custom_call.1} parent=115 // pred_region
          %s1334 = sand.u32 %s436, 1
          %s1335 = scalar_lea.sflag [#allocation5], %s1334
          %s1336 = sand.u32 %s436, 1
          %s1337 = smul.addr %s1336, 8
          %s1338 = scalar_lea.vmem [#allocation11], %s1337
          %1340 = dma.done %s1335, 128
        $region120: #{tpu_custom_call.1} parent=115 // pred_fallthru
          _
      $region116: #{tpu_custom_call.1} parent=5 // pred_fallthru
        _
    $region6: #{tpu_custom_call.1} parent=1 // loop_footer
      %s38 = sadd.s32 1, %s34
    $region7: #{tpu_custom_call.1} parent=1 // loop_footer_branch
      %33 = sbr.rel target = $region3
    $region8: #{tpu_custom_call.1} parent=1 // loop_exit
      _
    %1341 = vsyncpa [#allocation4], 1
    %s1342 = scalar_lea.sflag [#allocation4], 1
    %1343 = vsyncpa %s1342, 1
    %1344 = vsyncpa [#allocation7], 1
    %s1345 = scalar_lea.sflag [#allocation7], 1
    %1346 = vsyncpa %s1345, 1
    %1347 = vsyncpa [#allocation10], 1
    %1348 = vsyncpa [#allocation5], 1
    %s1349 = scalar_lea.sflag [#allocation5], 1
    %1350 = vsyncpa %s1349, 1

</llo_original>
